<compile_context>
chip_gen: v5e
topology: v5e:2x2
jax: 0.10.0
libtpu: 0.0.40
codegen_flags: <defaults>
</compile_context>

<pallas_src>
import functools
import math

import jax
import jax.numpy as jnp
from jax import lax
from jax.experimental import pallas as pl
from jax.experimental.pallas import tpu as pltpu

LN_EPS = 1e-5                      # torch.nn.LayerNorm default
LANE = 128                         # TPU lane width


def _round_up(n, m):
    return (n + m - 1) // m * m


def _vmem_budget_bytes():
    """Per-generation VMEM budget: 75% of physical (~48 MiB v7x, ~96 MiB v5e/v6e)."""
    try:
        cap = int(pltpu.get_tpu_info().vmem_capacity_bytes)
    except Exception:
        cap = 64 * 1024 * 1024     # conservative fallback (v7x physical per TC)
    return cap * 3 // 4


def _pick_row_tile(n_rows, d, hp, act_itemsize, scratch_budget):
    """Largest row tile that fits the leftover VMEM budget; >=2 tiles for v7x."""
    if n_rows <= 8:
        return max(n_rows, 1)
    base = 1024 if hp <= 2048 else 512
    # At least two row tiles so dimension_semantics=("parallel",) can use both
    # TensorCores on v7x (neutral on single-TC v5e/v6e).
    base = min(base, _round_up(pl.cdiv(n_rows, 2), 8))
    rt = max(_round_up(min(base, _round_up(n_rows, 8)), 8), 8)

    def need(r):                                   # per-tile VMEM footprint estimate
        return (4 * r * d * act_itemsize           # double-buffered x-in + out tiles
                + 6 * r * hp * 4)                  # f32 intermediates (h12, h, hn, ...)

    while rt > 8 and need(rt) > max(scratch_budget, 1 << 20):
        rt = max(_round_up(rt // 2, 8), 8)
    return rt


def ffn_glu_kernel(x_ref, w12_ref, b12_ref, gamma_ref, beta_ref, w3_ref, b3_ref,
                   o_ref, *, hidden_true, hp):
    # Single fused gate matmul: (rt, D) @ (D, 2*Hp) with f32 accumulation on the
    # MXU; operands stay in the prepared weight dtype (bf16 fast path).
    x = x_ref[...].astype(w12_ref.dtype)           # no-op when dtypes already match
    h12 = jnp.dot(x, w12_ref[...], preferred_element_type=jnp.float32) + b12_ref[...]
    h1 = h12[:, :hp]
    h2 = h12[:, hp:]
    h = jnp.maximum(h1, 0.0) * h2                  # padded hidden columns are exactly 0

    # LayerNorm over the TRUE hidden width.  No mask needed: padded columns of h
    # are zero, so sum(h) and sum(h*h) already equal the true-width sums.
    inv_h = jnp.float32(1.0 / hidden_true)
    mean = jnp.sum(h, axis=-1, keepdims=True) * inv_h
    var = jnp.maximum(jnp.sum(h * h, axis=-1, keepdims=True) * inv_h - mean * mean, 0.0)
    hn = (h - mean) * lax.rsqrt(var + LN_EPS)
    hn = hn * gamma_ref[...] + beta_ref[...]       # padded gamma/beta = 0 -> padded hn = 0

    # Output projection back to dim.
    out = jnp.dot(hn.astype(w3_ref.dtype), w3_ref[...],
                  preferred_element_type=jnp.float32) + b3_ref[...]
    o_ref[...] = out.astype(o_ref.dtype)


def prepare_params(params, *, matmul_dtype=None):
    """One-time weight prep (call once and cache — per-call HBM traffic is then
    just the activation):
      * fuse the gate projections: W12 = [W1 | W2], b12 = [b1 | b2]
      * zero-pad the hidden dim to a multiple of 128 (lane-dense internal tiles);
        the activation's token/feature dims are NOT padded (no HBM pad/slice copies)
      * matmul weights stored in `matmul_dtype` (bf16 recommended, decoupled from
        the activation dtype); biases / LayerNorm params stay f32.
    """
    D, H = params["w1"].shape
    Hp = _round_up(H, LANE)
    mm_dt = matmul_dtype or params["w1"].dtype
    f32 = jnp.float32

    def pad_h(a, axis):
        pad = [(0, 0)] * a.ndim
        pad[axis] = (0, Hp - H)
        return jnp.pad(a, pad)

    w12 = jnp.concatenate([pad_h(params["w1"].astype(mm_dt), 1),
                           pad_h(params["w2"].astype(mm_dt), 1)], axis=1)      # (D, 2*Hp)
    b12 = jnp.concatenate([pad_h(params["b1"].astype(f32).reshape(1, H), 1),
                           pad_h(params["b2"].astype(f32).reshape(1, H), 1)], axis=1)
    gamma = pad_h(params["gamma"].astype(f32).reshape(1, H), 1)
    beta = pad_h(params["beta"].astype(f32).reshape(1, H), 1)
    w3 = pad_h(params["w3"].astype(mm_dt), 0)                                  # (Hp, D)
    b3 = params["b3"].astype(f32).reshape(1, D)
    return dict(w12=w12, b12=b12, gamma=gamma, beta=beta, w3=w3, b3=b3,
                dim=D, hidden=H, hp=Hp)


def feedforward_glu(x, prep, *, row_tile=None):
    """TimeDistributed FFN-GLU: x (..., dim) -> (..., dim)."""
    lead = x.shape[:-1]
    D = x.shape[-1]
    assert D == prep["dim"], f"feature dim {D} != prepared dim {prep['dim']}"
    H, Hp = prep["hidden"], prep["hp"]
    N = int(math.prod(lead)) if lead else 1
    x2d = x.reshape(N, D)                       # TimeDistributed flatten (view, no copy)
    dt = x.dtype
    act_itemsize = jnp.dtype(dt).itemsize

    weight_bytes = sum(int(a.size) * jnp.dtype(a.dtype).itemsize
                       for a in (prep["w12"], prep["b12"], prep["gamma"],
                                 prep["beta"], prep["w3"], prep["b3"]))
    vmem_budget = _vmem_budget_bytes()
    # TODO(synk): when the resident weights alone approach the budget (e.g.
    # D=2048, H=8192 bf16 on v7x's 64 MiB), add a K-reduction ("arbitrary") grid
    # axis over D with a VMEM accumulator instead of resident W12/W3; Hp must
    # stay un-tiled so LayerNorm sees the full hidden width.
    if row_tile is None:
        row_tile = _pick_row_tile(N, D, Hp, act_itemsize, vmem_budget - weight_bytes)

    grid = (pl.cdiv(N, row_tile),)              # ragged last tile masked by Pallas
    resident = pl.BlockSpec(memory_space=pltpu.MemorySpace.VMEM)

    flops = 6 * N * D * Hp                      # fused gate matmul + output projection
    bytes_accessed = 2 * N * D * act_itemsize + weight_bytes

    kernel = pl.pallas_call(
        functools.partial(ffn_glu_kernel, hidden_true=H, hp=Hp),
        out_shape=jax.ShapeDtypeStruct((N, D), dt),
        grid_spec=pltpu.PrefetchScalarGridSpec(
            num_scalar_prefetch=0,
            grid=grid,
            in_specs=[
                # x row tile (pipelined). If profiling shows the DMA exposed in a
                # mem-bound regime, add pipeline_mode=pl.Buffered(3) here.
                pl.BlockSpec((row_tile, D), lambda i: (i, 0)),
                resident,   # W12  (D, 2*Hp) fused gate weights (single VMEM copy)
                resident,   # b12  (1, 2*Hp)
                resident,   # LN gamma (1, Hp)
                resident,   # LN beta  (1, Hp)
                resident,   # W3   (Hp, D)
                resident,   # b3   (1, D)
            ],
            out_specs=pl.BlockSpec((row_tile, D), lambda i: (i, 0)),
        ),
        compiler_params=pltpu.CompilerParams(
            dimension_semantics=("parallel",),   # shard row tiles across TCs (v7x)
            vmem_limit_bytes=vmem_budget),
        cost_estimate=pl.CostEstimate(flops=flops, transcendentals=N,
                                      bytes_accessed=bytes_accessed),
    )
    out = kernel(x2d, prep["w12"], prep["b12"], prep["gamma"], prep["beta"],
                 prep["w3"], prep["b3"])
    return out.reshape(*lead, D)


def init_params(key, dim, hidden_dim, dtype=jnp.float32):
    """Deterministic synthetic parameters (shapes match nn.Module __init__)."""
    ks = jax.random.split(key, 6)
    # Stored pre-transposed: (in, out), so kernel computes x @ W + b.
    w1 = jax.random.normal(ks[0], (dim, hidden_dim), dtype) * 0.05
    b1 = jax.random.normal(ks[1], (1, hidden_dim), dtype) * 0.05
    w2 = jax.random.normal(ks[2], (dim, hidden_dim), dtype) * 0.05
    b2 = jax.random.normal(ks[3], (1, hidden_dim), dtype) * 0.05
    gamma = jnp.ones((1, hidden_dim), dtype)
    beta = jnp.zeros((1, hidden_dim), dtype)
    w3 = jax.random.normal(ks[4], (hidden_dim, dim), dtype) * 0.05
    b3 = jax.random.normal(ks[5], (1, dim), dtype) * 0.05
    return dict(w1=w1, b1=b1, w2=w2, b2=b2, gamma=gamma, beta=beta,
                w3=w3, b3=b3)


def feedforward_glu_ref(x2d, p):
    """Pure-JAX reference matching the PyTorch forward (on flattened tokens)."""
    h1 = x2d @ p["w1"] + p["b1"]
    h2 = x2d @ p["w2"] + p["b2"]
    h = jnp.maximum(h1, 0.0) * h2
    mean = jnp.mean(h, axis=-1, keepdims=True)
    var = jnp.mean(jnp.square(h - mean), axis=-1, keepdims=True)
    hn = (h - mean) / jnp.sqrt(var + LN_EPS)
    hn = hn * p["gamma"] + p["beta"]
    return hn @ p["w3"] + p["b3"]


if __name__ == "__main__":
    B, S, DIM, HID = 4, 128, 32, 64
    key = jax.random.PRNGKey(0)
    kx, kp = jax.random.split(key)
    x = jax.random.normal(kx, (B, S, DIM), jnp.float32)
    params = init_params(kp, DIM, HID)

    ref = feedforward_glu_ref(x.reshape(-1, DIM), params).reshape(B, S, DIM)

    # f32 weights / f32 activations: tight check vs the pure-JAX reference.
    prep_f32 = prepare_params(params)                       # prepared once, cached
    out = jax.block_until_ready(feedforward_glu(x, prep_f32))
    assert out.shape == (B, S, DIM)
    assert jnp.allclose(out, ref, atol=2e-4, rtol=2e-4), "f32 mismatch vs reference"

    # bf16 matmul path decoupled from the (f32) input dtype: loose check.
    prep_bf16 = prepare_params(params, matmul_dtype=jnp.bfloat16)
    out_bf = jax.block_until_ready(feedforward_glu(x, prep_bf16))
    assert out_bf.dtype == jnp.float32
    assert jnp.allclose(out_bf, ref, atol=1e-1, rtol=1e-1), "bf16 mismatch vs reference"

    print("KERNEL_OK")
</pallas_src>

<mosaic_0001>
module attributes {stable_mosaic.version = 11 : i64} {
  func.func @ffn_glu_kernel(%arg0: i32, %arg1: memref<256x32xf32, #tpu.memory_space<vmem>>, %arg2: memref<32x256xf32, #tpu.memory_space<vmem>>, %arg3: memref<1x256xf32, #tpu.memory_space<vmem>>, %arg4: memref<1x128xf32, #tpu.memory_space<vmem>>, %arg5: memref<1x128xf32, #tpu.memory_space<vmem>>, %arg6: memref<128x32xf32, #tpu.memory_space<vmem>>, %arg7: memref<1x32xf32, #tpu.memory_space<vmem>>, %arg8: memref<256x32xf32, #tpu.memory_space<vmem>>) attributes {dimension_semantics = [#tpu.dimension_semantics<parallel>], iteration_bounds = array<i64: 2>, scalar_prefetch = 0 : i64, scratch_operands = 0 : i64, tpu.core_type = #tpu.core_type<tc>, window_params = [{transform_indices = @transform_0, window_bounds = array<i64: 256, 32>}, {pipeline_mode = #tpu.pipeline_mode<synchronous>, transform_indices = @transform_1, window_bounds = array<i64: 32, 256>}, {pipeline_mode = #tpu.pipeline_mode<synchronous>, transform_indices = @transform_2, window_bounds = array<i64: 1, 256>}, {pipeline_mode = #tpu.pipeline_mode<synchronous>, transform_indices = @transform_3, window_bounds = array<i64: 1, 128>}, {pipeline_mode = #tpu.pipeline_mode<synchronous>, transform_indices = @transform_4, window_bounds = array<i64: 1, 128>}, {pipeline_mode = #tpu.pipeline_mode<synchronous>, transform_indices = @transform_5, window_bounds = array<i64: 128, 32>}, {pipeline_mode = #tpu.pipeline_mode<synchronous>, transform_indices = @transform_6, window_bounds = array<i64: 1, 32>}, {transform_indices = @transform_7, window_bounds = array<i64: 256, 32>}]} {
    %c0 = arith.constant 0 : index
    %c0_0 = arith.constant 0 : index
    %0 = vector.load %arg1[%c0, %c0_0] : memref<256x32xf32, #tpu.memory_space<vmem>>, vector<256x32xf32>
    %c0_1 = arith.constant 0 : index
    %c0_2 = arith.constant 0 : index
    %1 = vector.load %arg2[%c0_1, %c0_2] : memref<32x256xf32, #tpu.memory_space<vmem>>, vector<32x256xf32>
    %cst = arith.constant dense<0.000000e+00> : vector<256x256xf32>
    %2 = tpu.matmul %0, %1, %cst {dimension_numbers = #tpu.dot_dimension_numbers<[1], [0], [0], [1], [0, 0, 1, 1], [], []>} : vector<256x32xf32>, vector<32x256xf32>, vector<256x256xf32> -> vector<256x256xf32>
    %c0_3 = arith.constant 0 : index
    %c0_4 = arith.constant 0 : index
    %3 = vector.load %arg3[%c0_3, %c0_4] : memref<1x256xf32, #tpu.memory_space<vmem>>, vector<1x256xf32>
    %4 = vector.broadcast %3 : vector<1x256xf32> to vector<256x256xf32>
    %5 = arith.addf %2, %4 : vector<256x256xf32>
    %6 = vector.extract_strided_slice %5 {offsets = [0, 0], sizes = [256, 128], strides = [1, 1]} : vector<256x256xf32> to vector<256x128xf32>
    %7 = vector.extract_strided_slice %5 {offsets = [0, 128], sizes = [256, 128], strides = [1, 1]} : vector<256x256xf32> to vector<256x128xf32>
    %cst_5 = arith.constant 0.000000e+00 : f32
    %8 = vector.broadcast %cst_5 : f32 to vector<256x128xf32>
    %9 = arith.maximumf %6, %8 : vector<256x128xf32>
    %10 = arith.mulf %9, %7 : vector<256x128xf32>
    %cst_6 = arith.constant dense<0.000000e+00> : vector<256xf32>
    %11 = vector.multi_reduction <add>, %10, %cst_6 [1] : vector<256x128xf32> to vector<256xf32>
    %12 = vector.shape_cast %11 : vector<256xf32> to vector<256x1xf32>
    %cst_7 = arith.constant 1.562500e-02 : f32
    %13 = vector.broadcast %cst_7 : f32 to vector<256x1xf32>
    %14 = arith.mulf %12, %13 : vector<256x1xf32>
    %15 = arith.mulf %10, %10 : vector<256x128xf32>
    %cst_8 = arith.constant dense<0.000000e+00> : vector<256xf32>
    %16 = vector.multi_reduction <add>, %15, %cst_8 [1] : vector<256x128xf32> to vector<256xf32>
    %17 = vector.shape_cast %16 : vector<256xf32> to vector<256x1xf32>
    %cst_9 = arith.constant 1.562500e-02 : f32
    %18 = vector.broadcast %cst_9 : f32 to vector<256x1xf32>
    %19 = arith.mulf %17, %18 : vector<256x1xf32>
    %20 = arith.mulf %14, %14 : vector<256x1xf32>
    %21 = arith.subf %19, %20 : vector<256x1xf32>
    %cst_10 = arith.constant 0.000000e+00 : f32
    %22 = vector.broadcast %cst_10 : f32 to vector<256x1xf32>
    %23 = arith.maximumf %21, %22 : vector<256x1xf32>
    %24 = vector.broadcast %14 : vector<256x1xf32> to vector<256x128xf32>
    %25 = arith.subf %10, %24 : vector<256x128xf32>
    %cst_11 = arith.constant 9.99999974E-6 : f32
    %26 = vector.broadcast %cst_11 : f32 to vector<256x1xf32>
    %27 = arith.addf %23, %26 : vector<256x1xf32>
    %28 = math.rsqrt %27 : vector<256x1xf32>
    %29 = vector.broadcast %28 : vector<256x1xf32> to vector<256x128xf32>
    %30 = arith.mulf %25, %29 : vector<256x128xf32>
    %c0_12 = arith.constant 0 : index
    %c0_13 = arith.constant 0 : index
    %31 = vector.load %arg4[%c0_12, %c0_13] : memref<1x128xf32, #tpu.memory_space<vmem>>, vector<1x128xf32>
    %32 = vector.broadcast %31 : vector<1x128xf32> to vector<256x128xf32>
    %33 = arith.mulf %30, %32 : vector<256x128xf32>
    %c0_14 = arith.constant 0 : index
    %c0_15 = arith.constant 0 : index
    %34 = vector.load %arg5[%c0_14, %c0_15] : memref<1x128xf32, #tpu.memory_space<vmem>>, vector<1x128xf32>
    %35 = vector.broadcast %34 : vector<1x128xf32> to vector<256x128xf32>
    %36 = arith.addf %33, %35 : vector<256x128xf32>
    %c0_16 = arith.constant 0 : index
    %c0_17 = arith.constant 0 : index
    %37 = vector.load %arg6[%c0_16, %c0_17] : memref<128x32xf32, #tpu.memory_space<vmem>>, vector<128x32xf32>
    %cst_18 = arith.constant dense<0.000000e+00> : vector<256x32xf32>
    %38 = tpu.matmul %36, %37, %cst_18 {dimension_numbers = #tpu.dot_dimension_numbers<[1], [0], [0], [1], [0, 0, 1, 1], [], []>} : vector<256x128xf32>, vector<128x32xf32>, vector<256x32xf32> -> vector<256x32xf32>
    %c0_19 = arith.constant 0 : index
    %c0_20 = arith.constant 0 : index
    %39 = vector.load %arg7[%c0_19, %c0_20] : memref<1x32xf32, #tpu.memory_space<vmem>>, vector<1x32xf32>
    %40 = vector.broadcast %39 : vector<1x32xf32> to vector<256x32xf32>
    %41 = arith.addf %38, %40 : vector<256x32xf32>
    %c0_21 = arith.constant 0 : index
    %c0_22 = arith.constant 0 : index
    %42 = vector.load %arg8[%c0_21, %c0_22] : memref<256x32xf32, #tpu.memory_space<vmem>>, vector<256x32xf32>
    tpu.vector_store %arg8[%c0_21, %c0_22], %41 {strides = array<i32>} : memref<256x32xf32, #tpu.memory_space<vmem>>, vector<256x32xf32>,
    return
  }
  func.func @transform_0(%arg0: i32) -> (i32, i32) {
    %c0_i32 = arith.constant 0 : i32
    %c0_i32_0 = arith.constant 0 : i32
    return %arg0, %c0_i32 : i32, i32
  }
  func.func @transform_1(%arg0: i32) -> (i32, i32) {
    %c0_i32 = arith.constant 0 : i32
    %c0_i32_0 = arith.constant 0 : i32
    %c0_i32_1 = arith.constant 0 : i32
    return %c0_i32, %c0_i32_0 : i32, i32
  }
  func.func @transform_2(%arg0: i32) -> (i32, i32) {
    %c0_i32 = arith.constant 0 : i32
    %c0_i32_0 = arith.constant 0 : i32
    %c0_i32_1 = arith.constant 0 : i32
    return %c0_i32, %c0_i32_0 : i32, i32
  }
  func.func @transform_3(%arg0: i32) -> (i32, i32) {
    %c0_i32 = arith.constant 0 : i32
    %c0_i32_0 = arith.constant 0 : i32
    %c0_i32_1 = arith.constant 0 : i32
    return %c0_i32, %c0_i32_0 : i32, i32
  }
  func.func @transform_4(%arg0: i32) -> (i32, i32) {
    %c0_i32 = arith.constant 0 : i32
    %c0_i32_0 = arith.constant 0 : i32
    %c0_i32_1 = arith.constant 0 : i32
    return %c0_i32, %c0_i32_0 : i32, i32
  }
  func.func @transform_5(%arg0: i32) -> (i32, i32) {
    %c0_i32 = arith.constant 0 : i32
    %c0_i32_0 = arith.constant 0 : i32
    %c0_i32_1 = arith.constant 0 : i32
    return %c0_i32, %c0_i32_0 : i32, i32
  }
  func.func @transform_6(%arg0: i32) -> (i32, i32) {
    %c0_i32 = arith.constant 0 : i32
    %c0_i32_0 = arith.constant 0 : i32
    %c0_i32_1 = arith.constant 0 : i32
    return %c0_i32, %c0_i32_0 : i32, i32
  }
  func.func @transform_7(%arg0: i32) -> (i32, i32) {
    %c0_i32 = arith.constant 0 : i32
    %c0_i32_0 = arith.constant 0 : i32
    return %arg0, %c0_i32 : i32, i32
  }
}

</mosaic_0001>

<llo_original>
// kernel: tpu_custom_call.1
$region0: #{tpu_custom_call.1}
  #allocation0 [shape = 'u32[]', space=smem, size = 0x4, offset = 0x4, fixed_abs, tag = 'smem constant byte address 0x4 - core index']
  #allocation1 [shape = 'u32[72,128]{1,0:T(1,128)}', space=vmem, size = 0x9000, scoped, tag = 'internal scratch']
  %s0 = inlined_call_operand.vmem [shape: f32[512,32], index: 0, kind: input, shape index: {}]
  %s1 = inlined_call_operand.vmem [shape: f32[32,256], index: 1, kind: input, shape index: {}]
  %s2 = inlined_call_operand.vmem [shape: f32[1,256], index: 2, kind: input, shape index: {}]
  %s3 = inlined_call_operand.vmem [shape: f32[1,128], index: 3, kind: input, shape index: {}]
  %s4 = inlined_call_operand.vmem [shape: f32[1,128], index: 4, kind: input, shape index: {}]
  %s5 = inlined_call_operand.vmem [shape: f32[128,32], index: 5, kind: input, shape index: {}]
  %s6 = inlined_call_operand.vmem [shape: f32[1,32], index: 6, kind: input, shape index: {}]
  %s7 = inlined_call_operand.vmem [shape: f32[512,32], index: 7, kind: output, shape index: {}]
  %s8 = sld [smem:[#allocation0]]
  $region61: #{tpu_custom_call.1} parent=0
    _
  %s10 = ssub.s32 1, %s8
  %s11 = scalar_select 0, %s10, %s8
  loop: start=0, step=1, limit=4
  $region2: #{tpu_custom_call.1} parent=0 // loop_pre_header
    _
  $region3: #{tpu_custom_call.1} parent=0 // loop_header
    %s13 = sphi 0, %s17
    %p14 = scmp.ge.s32.totalorder %s13, 4
    %s23 = sphi 0, %s25
    %s26 = sphi 0, %s23
    %s27 = sphi 0, %s26
    %s43 = sphi 0, %s27
    %s47 = sphi 0, %s47
    %s49 = sphi 0, %s47
    %s50 = sphi 0, %s49
    %s64 = sphi 0, %s50
    %s68 = sphi 0, %s68
    %s70 = sphi 0, %s68
    %s71 = sphi 0, %s70
    %s85 = sphi 0, %s71
    %s89 = sphi 0, %s89
    %s91 = sphi 0, %s89
    %s92 = sphi 0, %s91
    %s106 = sphi 0, %s92
    %s110 = sphi 0, %s110
    %s112 = sphi 0, %s110
    %s113 = sphi 0, %s112
    %s127 = sphi 0, %s113
    %s131 = sphi 0, %s131
    %s133 = sphi 0, %s131
    %s134 = sphi 0, %s133
    %s148 = sphi 0, %s134
    %s152 = sphi 0, %s152
    %s154 = sphi 0, %s152
    %s155 = sphi 0, %s154
    %s169 = sphi 0, %s155
    %s175 = sphi 0, %s177
    %s178 = sphi 0, %s175
    %s179 = sphi 0, %s178
    %s195 = sphi 0, %s179
  $region4: #{tpu_custom_call.1} parent=0 // loop_header_branch
    %16 = sbr.rel (%p14) target = $region8
  $region5: #{tpu_custom_call.1} parent=0 // loop_body
    %s18 = ssub.s32 %s13, 1
    %s19 = ssub.s32 %s13, 2
    %s20 = sadd.s32 %s13, 1
    %s21 = ssub.s32 %s13, %s20
    %p22 = scmp.eq.s32.totalorder %s21, 0
    %s24 = sadd.s32 %s23, 1
    %s25 = scalar_select %p22, %s23, %s24
    %p28 = pneg %p22
    %p29 = scmp.eq.s32.totalorder %s13, 1
    %p30 = por %p28, %p29
    %p31 = scmp.ne.s32.totalorder %s23, %s26
    %p32 = scmp.eq.s32.totalorder %s13, 0
    %p33 = por %p31, %p32
    %p34 = scmp.ne.s32.totalorder %s23, %s26
    %p35 = scmp.eq.s32.totalorder %s18, 1
    %p36 = por %p34, %p35
    %p37 = scmp.ne.s32.totalorder %s26, %s27
    %p38 = scmp.eq.s32.totalorder %s18, 0
    %p39 = por %p37, %p38
    %p40 = scmp.ne.s32.totalorder %s26, %s27
    %p41 = scmp.eq.s32.totalorder %s19, 1
    %p42 = por %p40, %p41
    %p44 = scmp.ne.s32.totalorder %s27, %s43
    %p45 = scmp.eq.s32.totalorder %s19, 0
    %p46 = por %p44, %p45
    %s48 = sadd.s32 %s47, 1
    %p51 = scmp.eq.s32.totalorder %s13, 1
    %p52 = scmp.ne.s32.totalorder %s47, %s49
    %p53 = scmp.eq.s32.totalorder %s13, 0
    %p54 = por %p52, %p53
    %p55 = scmp.ne.s32.totalorder %s47, %s49
    %p56 = scmp.eq.s32.totalorder %s18, 1
    %p57 = por %p55, %p56
    %p58 = scmp.ne.s32.totalorder %s49, %s50
    %p59 = scmp.eq.s32.totalorder %s18, 0
    %p60 = por %p58, %p59
    %p61 = scmp.ne.s32.totalorder %s49, %s50
    %p62 = scmp.eq.s32.totalorder %s19, 1
    %p63 = por %p61, %p62
    %p65 = scmp.ne.s32.totalorder %s50, %s64
    %p66 = scmp.eq.s32.totalorder %s19, 0
    %p67 = por %p65, %p66
    %s69 = sadd.s32 %s68, 1
    %p72 = scmp.eq.s32.totalorder %s13, 1
    %p73 = scmp.ne.s32.totalorder %s68, %s70
    %p74 = scmp.eq.s32.totalorder %s13, 0
    %p75 = por %p73, %p74
    %p76 = scmp.ne.s32.totalorder %s68, %s70
    %p77 = scmp.eq.s32.totalorder %s18, 1
    %p78 = por %p76, %p77
    %p79 = scmp.ne.s32.totalorder %s70, %s71
    %p80 = scmp.eq.s32.totalorder %s18, 0
    %p81 = por %p79, %p80
    %p82 = scmp.ne.s32.totalorder %s70, %s71
    %p83 = scmp.eq.s32.totalorder %s19, 1
    %p84 = por %p82, %p83
    %p86 = scmp.ne.s32.totalorder %s71, %s85
    %p87 = scmp.eq.s32.totalorder %s19, 0
    %p88 = por %p86, %p87
    %s90 = sadd.s32 %s89, 1
    %p93 = scmp.eq.s32.totalorder %s13, 1
    %p94 = scmp.ne.s32.totalorder %s89, %s91
    %p95 = scmp.eq.s32.totalorder %s13, 0
    %p96 = por %p94, %p95
    %p97 = scmp.ne.s32.totalorder %s89, %s91
    %p98 = scmp.eq.s32.totalorder %s18, 1
    %p99 = por %p97, %p98
    %p100 = scmp.ne.s32.totalorder %s91, %s92
    %p101 = scmp.eq.s32.totalorder %s18, 0
    %p102 = por %p100, %p101
    %p103 = scmp.ne.s32.totalorder %s91, %s92
    %p104 = scmp.eq.s32.totalorder %s19, 1
    %p105 = por %p103, %p104
    %p107 = scmp.ne.s32.totalorder %s92, %s106
    %p108 = scmp.eq.s32.totalorder %s19, 0
    %p109 = por %p107, %p108
    %s111 = sadd.s32 %s110, 1
    %p114 = scmp.eq.s32.totalorder %s13, 1
    %p115 = scmp.ne.s32.totalorder %s110, %s112
    %p116 = scmp.eq.s32.totalorder %s13, 0
    %p117 = por %p115, %p116
    %p118 = scmp.ne.s32.totalorder %s110, %s112
    %p119 = scmp.eq.s32.totalorder %s18, 1
    %p120 = por %p118, %p119
    %p121 = scmp.ne.s32.totalorder %s112, %s113
    %p122 = scmp.eq.s32.totalorder %s18, 0
    %p123 = por %p121, %p122
    %p124 = scmp.ne.s32.totalorder %s112, %s113
    %p125 = scmp.eq.s32.totalorder %s19, 1
    %p126 = por %p124, %p125
    %p128 = scmp.ne.s32.totalorder %s113, %s127
    %p129 = scmp.eq.s32.totalorder %s19, 0
    %p130 = por %p128, %p129
    %s132 = sadd.s32 %s131, 1
    %p135 = scmp.eq.s32.totalorder %s13, 1
    %p136 = scmp.ne.s32.totalorder %s131, %s133
    %p137 = scmp.eq.s32.totalorder %s13, 0
    %p138 = por %p136, %p137
    %p139 = scmp.ne.s32.totalorder %s131, %s133
    %p140 = scmp.eq.s32.totalorder %s18, 1
    %p141 = por %p139, %p140
    %p142 = scmp.ne.s32.totalorder %s133, %s134
    %p143 = scmp.eq.s32.totalorder %s18, 0
    %p144 = por %p142, %p143
    %p145 = scmp.ne.s32.totalorder %s133, %s134
    %p146 = scmp.eq.s32.totalorder %s19, 1
    %p147 = por %p145, %p146
    %p149 = scmp.ne.s32.totalorder %s134, %s148
    %p150 = scmp.eq.s32.totalorder %s19, 0
    %p151 = por %p149, %p150
    %s153 = sadd.s32 %s152, 1
    %p156 = scmp.eq.s32.totalorder %s13, 1
    %p157 = scmp.ne.s32.totalorder %s152, %s154
    %p158 = scmp.eq.s32.totalorder %s13, 0
    %p159 = por %p157, %p158
    %p160 = scmp.ne.s32.totalorder %s152, %s154
    %p161 = scmp.eq.s32.totalorder %s18, 1
    %p162 = por %p160, %p161
    %p163 = scmp.ne.s32.totalorder %s154, %s155
    %p164 = scmp.eq.s32.totalorder %s18, 0
    %p165 = por %p163, %p164
    %p166 = scmp.ne.s32.totalorder %s154, %s155
    %p167 = scmp.eq.s32.totalorder %s19, 1
    %p168 = por %p166, %p167
    %p170 = scmp.ne.s32.totalorder %s155, %s169
    %p171 = scmp.eq.s32.totalorder %s19, 0
    %p172 = por %p170, %p171
    %s173 = ssub.s32 %s13, %s20
    %p174 = scmp.eq.s32.totalorder %s173, 0
    %s176 = sadd.s32 %s175, 1
    %s177 = scalar_select %p174, %s175, %s176
    %p180 = pneg %p174
    %p181 = scmp.eq.s32.totalorder %s13, 1
    %p182 = por %p180, %p181
    %p183 = scmp.ne.s32.totalorder %s175, %s178
    %p184 = scmp.eq.s32.totalorder %s13, 0
    %p185 = por %p183, %p184
    %p186 = scmp.ne.s32.totalorder %s175, %s178
    %p187 = scmp.eq.s32.totalorder %s18, 1
    %p188 = por %p186, %p187
    %p189 = scmp.ne.s32.totalorder %s178, %s179
    %p190 = scmp.eq.s32.totalorder %s18, 0
    %p191 = por %p189, %p190
    %p192 = scmp.ne.s32.totalorder %s178, %s179
    %p193 = scmp.eq.s32.totalorder %s19, 1
    %p194 = por %p192, %p193
    %p196 = scmp.ne.s32.totalorder %s179, %s195
    %p197 = scmp.eq.s32.totalorder %s19, 0
    %p198 = por %p196, %p197
    %p199 = scmp.le.s32.totalorder 1, %s13
    %p200 = scmp.lt.s32.totalorder %s13, 3
    %p201 = pnand %p199, %p200
    %p202 = pneg %p201
    // Predicated region
    $region9: #{tpu_custom_call.1} parent=5 // pred_check
      _
    $region10: #{tpu_custom_call.1} parent=5 // pred_check_branch
      %204 = sbr.rel (%p201) target = $region12
    $region11: #{tpu_custom_call.1} parent=5 // pred_region
      %s205 = ssub.s32 %s13, 1
      // Predicated region
      $region13: #{tpu_custom_call.1} parent=11 // pred_check
        %p206 = pneg %p60
      $region14: #{tpu_custom_call.1} parent=11 // pred_check_branch
        %208 = sbr.rel (%p206) target = $region16
      $region15: #{tpu_custom_call.1} parent=11 // pred_region
        _
      $region16: #{tpu_custom_call.1} parent=11 // pred_fallthru
        _
      // Predicated region
      $region17: #{tpu_custom_call.1} parent=11 // pred_check
        %p209 = pneg %p81
      $region18: #{tpu_custom_call.1} parent=11 // pred_check_branch
        %211 = sbr.rel (%p209) target = $region20
      $region19: #{tpu_custom_call.1} parent=11 // pred_region
        _
      $region20: #{tpu_custom_call.1} parent=11 // pred_fallthru
        _
      // Predicated region
      $region21: #{tpu_custom_call.1} parent=11 // pred_check
        %p212 = pneg %p102
      $region22: #{tpu_custom_call.1} parent=11 // pred_check_branch
        %214 = sbr.rel (%p212) target = $region24
      $region23: #{tpu_custom_call.1} parent=11 // pred_region
        _
      $region24: #{tpu_custom_call.1} parent=11 // pred_fallthru
        _
      // Predicated region
      $region25: #{tpu_custom_call.1} parent=11 // pred_check
        %p215 = pneg %p123
      $region26: #{tpu_custom_call.1} parent=11 // pred_check_branch
        %217 = sbr.rel (%p215) target = $region28
      $region27: #{tpu_custom_call.1} parent=11 // pred_region
        _
      $region28: #{tpu_custom_call.1} parent=11 // pred_fallthru
        _
      // Predicated region
      $region29: #{tpu_custom_call.1} parent=11 // pred_check
        %p218 = pneg %p144
      $region30: #{tpu_custom_call.1} parent=11 // pred_check_branch
        %220 = sbr.rel (%p218) target = $region32
      $region31: #{tpu_custom_call.1} parent=11 // pred_region
        _
      $region32: #{tpu_custom_call.1} parent=11 // pred_fallthru
        _
      // Predicated region
      $region33: #{tpu_custom_call.1} parent=11 // pred_check
        %p221 = pneg %p165
      $region34: #{tpu_custom_call.1} parent=11 // pred_check_branch
        %223 = sbr.rel (%p221) target = $region36
      $region35: #{tpu_custom_call.1} parent=11 // pred_region
        _
      $region36: #{tpu_custom_call.1} parent=11 // pred_fallthru
        _
    $region12: #{tpu_custom_call.1} parent=5 // pred_fallthru
      _
    %p224 = scmp.lt.s32.totalorder %s13, 2
    // Predicated region
    $region37: #{tpu_custom_call.1} parent=5 // pred_check
      %p225 = pneg %p224
    $region38: #{tpu_custom_call.1} parent=5 // pred_check_branch
      %227 = sbr.rel (%p225) target = $region40
    $region39: #{tpu_custom_call.1} parent=5 // pred_region
      // Predicated region
      $region41: #{tpu_custom_call.1} parent=39 // pred_check
        %p228 = pneg %p33
      $region42: #{tpu_custom_call.1} parent=39 // pred_check_branch
        %230 = sbr.rel (%p228) target = $region44
      $region43: #{tpu_custom_call.1} parent=39 // pred_region
        %s231 = smul.u32 32, %s13
        %p232 = scmp.lt.s32.totalorder %s231, 63
        %s233 = scalar_select %p232, %s231, 63
        %s234 = smul.addr %s233, 8
        %s235 = scalar_lea.vmem %s0, %s234
        %s236 = smul.u32 32, %s13
      $region44: #{tpu_custom_call.1} parent=39 // pred_fallthru
        _
    $region40: #{tpu_custom_call.1} parent=5 // pred_fallthru
      _
    %p237 = scmp.le.s32.totalorder 1, %s13
    %p238 = scmp.lt.s32.totalorder %s13, 3
    %p239 = pnand %p237, %p238
    %p240 = pneg %p239
    // Predicated region
    $region45: #{tpu_custom_call.1} parent=5 // pred_check
      _
    $region46: #{tpu_custom_call.1} parent=5 // pred_check_branch
      %242 = sbr.rel (%p239) target = $region48
    $region47: #{tpu_custom_call.1} parent=5 // pred_region
      %s243 = ssub.s32 %s13, 1
      %s244 = smul.u32 32, %s18
      %p245 = scmp.lt.s32.totalorder %s244, 63
      %s246 = scalar_select %p245, %s244, 63
      %s247 = smul.addr %s246, 8
      %s248 = scalar_lea.vmem %s0, %s247
      %p249 = pneg %p39
      %p250 = pneg %p36
      %p251 = pneg %p60
      %p252 = pneg %p57
      %p253 = pneg %p81
      %p254 = pneg %p78
      %p255 = pneg %p102
      %p256 = pneg %p99
      %p257 = pneg %p123
      %p258 = pneg %p120
      %p259 = pneg %p144
      %p260 = pneg %p141
      %p261 = pneg %p165
      %p262 = pneg %p162
      %p263 = pneg %p191
      %p264 = pneg %p188
      %s265 = smul.u32 32, %s18
      %p266 = scmp.lt.s32.totalorder %s265, 63
      %s267 = scalar_select %p266, %s265, 63
      %s268 = smul.addr %s267, 8
      %s269 = scalar_lea.vmem %s7, %s268
      %s270 = smul.u32 32, %s18
      %p271 = scmp.lt.s32.totalorder %s270, 63
      %s272 = scalar_select %p271, %s270, 63
      %s273 = smul.addr %s272, 8
      %s274 = scalar_lea.vmem %s0, %s273
      %s275 = smul.u32 32, %s18
      %s276 = smul.u32 32, %s18
      %p277 = scmp.lt.s32.totalorder %s276, 63
      %s278 = scalar_select %p277, %s276, 63
      %s279 = smul.addr %s278, 8
      %s280 = scalar_lea.vmem %s7, %s279
      %s281 = smul.u32 32, %s18
      %v282 = vld [vmem:[%s274] sm:$0xff]
      %v283 = vld [vmem:[%s274 + $0x8] sm:$0xff]
      %v284 = vld [vmem:[%s274 + $0x10] sm:$0xff]
      %v285 = vld [vmem:[%s274 + $0x18] sm:$0xff]
      %v286 = vld [vmem:[%s274 + $0x20] sm:$0xff]
      %v287 = vld [vmem:[%s274 + $0x28] sm:$0xff]
      %v288 = vld [vmem:[%s274 + $0x30] sm:$0xff]
      %v289 = vld [vmem:[%s274 + $0x38] sm:$0xff]
      %v290 = vld [vmem:[%s274 + $0x40] sm:$0xff]
      %v291 = vld [vmem:[%s274 + $0x48] sm:$0xff]
      %v292 = vld [vmem:[%s274 + $0x50] sm:$0xff]
      %v293 = vld [vmem:[%s274 + $0x58] sm:$0xff]
      %v294 = vld [vmem:[%s274 + $0x60] sm:$0xff]
      %v295 = vld [vmem:[%s274 + $0x68] sm:$0xff]
      %v296 = vld [vmem:[%s274 + $0x70] sm:$0xff]
      %v297 = vld [vmem:[%s274 + $0x78] sm:$0xff]
      %v298 = vld [vmem:[%s274 + $0x80] sm:$0xff]
      %v299 = vld [vmem:[%s274 + $0x88] sm:$0xff]
      %v300 = vld [vmem:[%s274 + $0x90] sm:$0xff]
      %v301 = vld [vmem:[%s274 + $0x98] sm:$0xff]
      %v302 = vld [vmem:[%s274 + $0xa0] sm:$0xff]
      %v303 = vld [vmem:[%s274 + $0xa8] sm:$0xff]
      %v304 = vld [vmem:[%s274 + $0xb0] sm:$0xff]
      %v305 = vld [vmem:[%s274 + $0xb8] sm:$0xff]
      %v306 = vld [vmem:[%s274 + $0xc0] sm:$0xff]
      %v307 = vld [vmem:[%s274 + $0xc8] sm:$0xff]
      %v308 = vld [vmem:[%s274 + $0xd0] sm:$0xff]
      %v309 = vld [vmem:[%s274 + $0xd8] sm:$0xff]
      %v310 = vld [vmem:[%s274 + $0xe0] sm:$0xff]
      %v311 = vld [vmem:[%s274 + $0xe8] sm:$0xff]
      %v312 = vld [vmem:[%s274 + $0xf0] sm:$0xff]
      %v313 = vld [vmem:[%s274 + $0xf8] sm:$0xff]
      %v314 = vld [vmem:[%s1] sm:$0xff]
      %v315 = vld [vmem:[%s1 + $0x8] sm:$0xff]
      %v316 = vld [vmem:[%s1 + $0x10] sm:$0xff]
      %v317 = vld [vmem:[%s1 + $0x18] sm:$0xff]
      %v318 = vld [vmem:[%s1 + $0x20] sm:$0xff]
      %v319 = vld [vmem:[%s1 + $0x28] sm:$0xff]
      %v320 = vld [vmem:[%s1 + $0x30] sm:$0xff]
      %v321 = vld [vmem:[%s1 + $0x38] sm:$0xff]
      %v322 = vld [vmem:[%s2] sm:$0x3]
      %v324 = vperm.slane %v322, 0
      %v325 = vperm.slane %v322, 1
      %vm328 = vcmask 261120
      %v330 = vsel %vm328, %v282, 0
      %v333 = vsel %vm328, %v283, 0
      %v336 = vsel %vm328, %v284, 0
      %v339 = vsel %vm328, %v285, 0
      %v342 = vsel %vm328, %v286, 0
      %v345 = vsel %vm328, %v287, 0
      %v348 = vsel %vm328, %v288, 0
      %v351 = vsel %vm328, %v289, 0
      %v354 = vsel %vm328, %v290, 0
      %v357 = vsel %vm328, %v291, 0
      %v360 = vsel %vm328, %v292, 0
      %v363 = vsel %vm328, %v293, 0
      %v366 = vsel %vm328, %v294, 0
      %v369 = vsel %vm328, %v295, 0
      %v372 = vsel %vm328, %v296, 0
      %v375 = vsel %vm328, %v297, 0
      %v378 = vsel %vm328, %v298, 0
      %v381 = vsel %vm328, %v299, 0
      %v384 = vsel %vm328, %v300, 0
      %v387 = vsel %vm328, %v301, 0
      %v390 = vsel %vm328, %v302, 0
      %v393 = vsel %vm328, %v303, 0
      %v396 = vsel %vm328, %v304, 0
      %v399 = vsel %vm328, %v305, 0
      %v402 = vsel %vm328, %v306, 0
      %v405 = vsel %vm328, %v307, 0
      %v408 = vsel %vm328, %v308, 0
      %v411 = vsel %vm328, %v309, 0
      %v414 = vsel %vm328, %v310, 0
      %v417 = vsel %vm328, %v311, 0
      %v420 = vsel %vm328, %v312, 0
      %v423 = vsel %vm328, %v313, 0
      %425 = vmatpush.msra.mxu0 0.0
      %426 = vmatpush.msra.mxu0 0.0
      %427 = vmatpush.msra.mxu0 0.0
      %428 = vmatpush.msra.mxu0 0.0
      %429 = vmatpush.msra.mxu0 0.0
      %430 = vmatpush.msra.mxu0 0.0
      %431 = vmatpush.msra.mxu0 0.0
      %432 = vmatpush.msra.mxu0 0.0
      %433 = vmatpush.msra.mxu0 0.0
      %434 = vmatpush.msra.mxu0 0.0
      %435 = vmatpush.msra.mxu0 0.0
      %436 = vmatpush.msra.mxu0 0.0
      %437 = vmatpush.msra.mxu0 %v320
      %438 = vmatpush.msra.mxu0 %v318
      %439 = vmatpush.msra.mxu0 %v316
      %440 = vmatpush.msra.mxu0 %v314
      %441 = vmatmul.f32.gmra.mxu0 %v330
      %v442 = vpop.f32.mrf.mxu0
      %v443 = vadd.f32 %v324, %v442
      %444 = vmatmul.f32.gmra.mxu0 %v333
      %v445 = vpop.f32.mrf.mxu0
      %v446 = vadd.f32 %v324, %v445
      %447 = vmatmul.f32.gmra.mxu0 %v336
      %v448 = vpop.f32.mrf.mxu0
      %v449 = vadd.f32 %v324, %v448
      %450 = vmatmul.f32.gmra.mxu0 %v339
      %v451 = vpop.f32.mrf.mxu0
      %v452 = vadd.f32 %v324, %v451
      %453 = vmatmul.f32.gmra.mxu0 %v342
      %v454 = vpop.f32.mrf.mxu0
      %v455 = vadd.f32 %v324, %v454
      %456 = vmatmul.f32.gmra.mxu0 %v345
      %v457 = vpop.f32.mrf.mxu0
      %v458 = vadd.f32 %v324, %v457
      %459 = vmatmul.f32.gmra.mxu0 %v348
      %v460 = vpop.f32.mrf.mxu0
      %v461 = vadd.f32 %v324, %v460
      %462 = vmatmul.f32.gmra.mxu0 %v351
      %v463 = vpop.f32.mrf.mxu0
      %v464 = vadd.f32 %v324, %v463
      %465 = vmatmul.f32.gmra.mxu0 %v354
      %v466 = vpop.f32.mrf.mxu0
      %v467 = vadd.f32 %v324, %v466
      %468 = vmatmul.f32.gmra.mxu0 %v357
      %v469 = vpop.f32.mrf.mxu0
      %v470 = vadd.f32 %v324, %v469
      %471 = vmatmul.f32.gmra.mxu0 %v360
      %v472 = vpop.f32.mrf.mxu0
      %v473 = vadd.f32 %v324, %v472
      %474 = vmatmul.f32.gmra.mxu0 %v363
      %v475 = vpop.f32.mrf.mxu0
      %v476 = vadd.f32 %v324, %v475
      %477 = vmatmul.f32.gmra.mxu0 %v366
      %v478 = vpop.f32.mrf.mxu0
      %v479 = vadd.f32 %v324, %v478
      %480 = vmatmul.f32.gmra.mxu0 %v369
      %v481 = vpop.f32.mrf.mxu0
      %v482 = vadd.f32 %v324, %v481
      %483 = vmatmul.f32.gmra.mxu0 %v372
      %v484 = vpop.f32.mrf.mxu0
      %v485 = vadd.f32 %v324, %v484
      %486 = vmatmul.f32.gmra.mxu0 %v375
      %v487 = vpop.f32.mrf.mxu0
      %v488 = vadd.f32 %v324, %v487
      %489 = vmatmul.f32.gmra.mxu0 %v378
      %v490 = vpop.f32.mrf.mxu0
      %v491 = vadd.f32 %v324, %v490
      %492 = vmatmul.f32.gmra.mxu0 %v381
      %v493 = vpop.f32.mrf.mxu0
      %v494 = vadd.f32 %v324, %v493
      %495 = vmatmul.f32.gmra.mxu0 %v384
      %v496 = vpop.f32.mrf.mxu0
      %v497 = vadd.f32 %v324, %v496
      %498 = vmatmul.f32.gmra.mxu0 %v387
      %v499 = vpop.f32.mrf.mxu0
      %v500 = vadd.f32 %v324, %v499
      %501 = vmatmul.f32.gmra.mxu0 %v390
      %v502 = vpop.f32.mrf.mxu0
      %v503 = vadd.f32 %v324, %v502
      %504 = vmatmul.f32.gmra.mxu0 %v393
      %v505 = vpop.f32.mrf.mxu0
      %v506 = vadd.f32 %v324, %v505
      %507 = vmatmul.f32.gmra.mxu0 %v396
      %v508 = vpop.f32.mrf.mxu0
      %v509 = vadd.f32 %v324, %v508
      %510 = vmatmul.f32.gmra.mxu0 %v399
      %v511 = vpop.f32.mrf.mxu0
      %v512 = vadd.f32 %v324, %v511
      %513 = vmatmul.f32.gmra.mxu0 %v402
      %v514 = vpop.f32.mrf.mxu0
      %v515 = vadd.f32 %v324, %v514
      %516 = vmatmul.f32.gmra.mxu0 %v405
      %v517 = vpop.f32.mrf.mxu0
      %v518 = vadd.f32 %v324, %v517
      %519 = vmatmul.f32.gmra.mxu0 %v408
      %v520 = vpop.f32.mrf.mxu0
      %v521 = vadd.f32 %v324, %v520
      %522 = vmatmul.f32.gmra.mxu0 %v411
      %v523 = vpop.f32.mrf.mxu0
      %v524 = vadd.f32 %v324, %v523
      %525 = vmatmul.f32.gmra.mxu0 %v414
      %v526 = vpop.f32.mrf.mxu0
      %v527 = vadd.f32 %v324, %v526
      %528 = vmatmul.f32.gmra.mxu0 %v417
      %v529 = vpop.f32.mrf.mxu0
      %v530 = vadd.f32 %v324, %v529
      %531 = vmatmul.f32.gmra.mxu0 %v420
      %v532 = vpop.f32.mrf.mxu0
      %v533 = vadd.f32 %v324, %v532
      %534 = vmatmul.f32.gmra.mxu0 %v423
      %v535 = vpop.f32.mrf.mxu0
      %v536 = vadd.f32 %v324, %v535
      %537 = vdwg.mxu0
      %538 = vmatpush.msra.mxu0 0.0
      %539 = vmatpush.msra.mxu0 0.0
      %540 = vmatpush.msra.mxu0 0.0
      %541 = vmatpush.msra.mxu0 0.0
      %542 = vmatpush.msra.mxu0 0.0
      %543 = vmatpush.msra.mxu0 0.0
      %544 = vmatpush.msra.mxu0 0.0
      %545 = vmatpush.msra.mxu0 0.0
      %546 = vmatpush.msra.mxu0 0.0
      %547 = vmatpush.msra.mxu0 0.0
      %548 = vmatpush.msra.mxu0 0.0
      %549 = vmatpush.msra.mxu0 0.0
      %550 = vmatpush.msra.mxu0 %v321
      %551 = vmatpush.msra.mxu0 %v319
      %552 = vmatpush.msra.mxu0 %v317
      %553 = vmatpush.msra.mxu0 %v315
      %554 = vmatmul.f32.gmra.mxu0 %v330
      %v555 = vpop.f32.mrf.mxu0
      %v556 = vadd.f32 %v325, %v555
      %557 = vmatmul.f32.gmra.mxu0 %v333
      %v558 = vpop.f32.mrf.mxu0
      %v559 = vadd.f32 %v325, %v558
      %560 = vmatmul.f32.gmra.mxu0 %v336
      %v561 = vpop.f32.mrf.mxu0
      %v562 = vadd.f32 %v325, %v561
      %563 = vmatmul.f32.gmra.mxu0 %v339
      %v564 = vpop.f32.mrf.mxu0
      %v565 = vadd.f32 %v325, %v564
      %566 = vmatmul.f32.gmra.mxu0 %v342
      %v567 = vpop.f32.mrf.mxu0
      %v568 = vadd.f32 %v325, %v567
      %569 = vmatmul.f32.gmra.mxu0 %v345
      %v570 = vpop.f32.mrf.mxu0
      %v571 = vadd.f32 %v325, %v570
      %572 = vmatmul.f32.gmra.mxu0 %v348
      %v573 = vpop.f32.mrf.mxu0
      %v574 = vadd.f32 %v325, %v573
      %575 = vmatmul.f32.gmra.mxu0 %v351
      %v576 = vpop.f32.mrf.mxu0
      %v577 = vadd.f32 %v325, %v576
      %578 = vmatmul.f32.gmra.mxu0 %v354
      %v579 = vpop.f32.mrf.mxu0
      %v580 = vadd.f32 %v325, %v579
      %581 = vmatmul.f32.gmra.mxu0 %v357
      %v582 = vpop.f32.mrf.mxu0
      %v583 = vadd.f32 %v325, %v582
      %584 = vmatmul.f32.gmra.mxu0 %v360
      %v585 = vpop.f32.mrf.mxu0
      %v586 = vadd.f32 %v325, %v585
      %587 = vmatmul.f32.gmra.mxu0 %v363
      %v588 = vpop.f32.mrf.mxu0
      %v589 = vadd.f32 %v325, %v588
      %590 = vmatmul.f32.gmra.mxu0 %v366
      %v591 = vpop.f32.mrf.mxu0
      %v592 = vadd.f32 %v325, %v591
      %593 = vmatmul.f32.gmra.mxu0 %v369
      %v594 = vpop.f32.mrf.mxu0
      %v595 = vadd.f32 %v325, %v594
      %596 = vmatmul.f32.gmra.mxu0 %v372
      %v597 = vpop.f32.mrf.mxu0
      %v598 = vadd.f32 %v325, %v597
      %599 = vmatmul.f32.gmra.mxu0 %v375
      %v600 = vpop.f32.mrf.mxu0
      %v601 = vadd.f32 %v325, %v600
      %602 = vmatmul.f32.gmra.mxu0 %v378
      %v603 = vpop.f32.mrf.mxu0
      %v604 = vadd.f32 %v325, %v603
      %605 = vmatmul.f32.gmra.mxu0 %v381
      %v606 = vpop.f32.mrf.mxu0
      %v607 = vadd.f32 %v325, %v606
      %608 = vmatmul.f32.gmra.mxu0 %v384
      %v609 = vpop.f32.mrf.mxu0
      %v610 = vadd.f32 %v325, %v609
      %611 = vmatmul.f32.gmra.mxu0 %v387
      %v612 = vpop.f32.mrf.mxu0
      %v613 = vadd.f32 %v325, %v612
      %614 = vmatmul.f32.gmra.mxu0 %v390
      %v615 = vpop.f32.mrf.mxu0
      %v616 = vadd.f32 %v325, %v615
      %617 = vmatmul.f32.gmra.mxu0 %v393
      %v618 = vpop.f32.mrf.mxu0
      %v619 = vadd.f32 %v325, %v618
      %620 = vmatmul.f32.gmra.mxu0 %v396
      %v621 = vpop.f32.mrf.mxu0
      %v622 = vadd.f32 %v325, %v621
      %623 = vmatmul.f32.gmra.mxu0 %v399
      %v624 = vpop.f32.mrf.mxu0
      %v625 = vadd.f32 %v325, %v624
      %626 = vmatmul.f32.gmra.mxu0 %v402
      %v627 = vpop.f32.mrf.mxu0
      %v628 = vadd.f32 %v325, %v627
      %629 = vmatmul.f32.gmra.mxu0 %v405
      %v630 = vpop.f32.mrf.mxu0
      %v631 = vadd.f32 %v325, %v630
      %632 = vmatmul.f32.gmra.mxu0 %v408
      %v633 = vpop.f32.mrf.mxu0
      %v634 = vadd.f32 %v325, %v633
      %635 = vmatmul.f32.gmra.mxu0 %v411
      %v636 = vpop.f32.mrf.mxu0
      %v637 = vadd.f32 %v325, %v636
      %638 = vmatmul.f32.gmra.mxu0 %v414
      %v639 = vpop.f32.mrf.mxu0
      %v640 = vadd.f32 %v325, %v639
      %641 = vmatmul.f32.gmra.mxu0 %v417
      %v642 = vpop.f32.mrf.mxu0
      %v643 = vadd.f32 %v325, %v642
      %644 = vmatmul.f32.gmra.mxu0 %v420
      %v645 = vpop.f32.mrf.mxu0
      %v646 = vadd.f32 %v325, %v645
      %647 = vmatmul.f32.gmra.mxu0 %v423
      %v648 = vpop.f32.mrf.mxu0
      %v649 = vadd.f32 %v325, %v648
      %650 = vdwg.mxu0
      %v651 = vmax.f32 %v443, 0.0
      %v652 = vmax.f32 %v446, 0.0
      %v653 = vmax.f32 %v449, 0.0
      %v654 = vmax.f32 %v452, 0.0
      %v655 = vmax.f32 %v455, 0.0
      %v656 = vmax.f32 %v458, 0.0
      %v657 = vmax.f32 %v461, 0.0
      %v658 = vmax.f32 %v464, 0.0
      %v659 = vmax.f32 %v467, 0.0
      %v660 = vmax.f32 %v470, 0.0
      %v661 = vmax.f32 %v473, 0.0
      %v662 = vmax.f32 %v476, 0.0
      %v663 = vmax.f32 %v479, 0.0
      %v664 = vmax.f32 %v482, 0.0
      %v665 = vmax.f32 %v485, 0.0
      %v666 = vmax.f32 %v488, 0.0
      %v667 = vmax.f32 %v491, 0.0
      %v668 = vmax.f32 %v494, 0.0
      %v669 = vmax.f32 %v497, 0.0
      %v670 = vmax.f32 %v500, 0.0
      %v671 = vmax.f32 %v503, 0.0
      %v672 = vmax.f32 %v506, 0.0
      %v673 = vmax.f32 %v509, 0.0
      %v674 = vmax.f32 %v512, 0.0
      %v675 = vmax.f32 %v515, 0.0
      %v676 = vmax.f32 %v518, 0.0
      %v677 = vmax.f32 %v521, 0.0
      %v678 = vmax.f32 %v524, 0.0
      %v679 = vmax.f32 %v527, 0.0
      %v680 = vmax.f32 %v530, 0.0
      %v681 = vmax.f32 %v533, 0.0
      %v682 = vmax.f32 %v536, 0.0
      %v683 = vmul.f32 %v651, %v556
      %v684 = vmul.f32 %v652, %v559
      %v685 = vmul.f32 %v653, %v562
      %v686 = vmul.f32 %v654, %v565
      %v687 = vmul.f32 %v655, %v568
      %v688 = vmul.f32 %v656, %v571
      %v689 = vmul.f32 %v657, %v574
      %v690 = vmul.f32 %v658, %v577
      %v691 = vmul.f32 %v659, %v580
      %v692 = vmul.f32 %v660, %v583
      %v693 = vmul.f32 %v661, %v586
      %v694 = vmul.f32 %v662, %v589
      %v695 = vmul.f32 %v663, %v592
      %v696 = vmul.f32 %v664, %v595
      %v697 = vmul.f32 %v665, %v598
      %v698 = vmul.f32 %v666, %v601
      %v699 = vmul.f32 %v667, %v604
      %v700 = vmul.f32 %v668, %v607
      %v701 = vmul.f32 %v669, %v610
      %v702 = vmul.f32 %v670, %v613
      %v703 = vmul.f32 %v671, %v616
      %v704 = vmul.f32 %v672, %v619
      %v705 = vmul.f32 %v673, %v622
      %v706 = vmul.f32 %v674, %v625
      %v707 = vmul.f32 %v675, %v628
      %v708 = vmul.f32 %v676, %v631
      %v709 = vmul.f32 %v677, %v634
      %v710 = vmul.f32 %v678, %v637
      %v711 = vmul.f32 %v679, %v640
      %v712 = vmul.f32 %v680, %v643
      %v713 = vmul.f32 %v681, %v646
      %v714 = vmul.f32 %v682, %v649
      %715 = vadd.xlane.f32.xlu0 %v683
      %v716 = vpop.xlane.xlu0 %715
      %717 = vadd.xlane.f32.xlu0 %v684
      %v718 = vpop.xlane.xlu0 %717
      %719 = vadd.xlane.f32.xlu0 %v685
      %v720 = vpop.xlane.xlu0 %719
      %721 = vadd.xlane.f32.xlu0 %v686
      %v722 = vpop.xlane.xlu0 %721
      %723 = vadd.xlane.f32.xlu0 %v687
      %v724 = vpop.xlane.xlu0 %723
      %725 = vadd.xlane.f32.xlu0 %v688
      %v726 = vpop.xlane.xlu0 %725
      %727 = vadd.xlane.f32.xlu0 %v689
      %v728 = vpop.xlane.xlu0 %727
      %729 = vadd.xlane.f32.xlu0 %v690
      %v730 = vpop.xlane.xlu0 %729
      %731 = vadd.xlane.f32.xlu0 %v691
      %v732 = vpop.xlane.xlu0 %731
      %733 = vadd.xlane.f32.xlu0 %v692
      %v734 = vpop.xlane.xlu0 %733
      %735 = vadd.xlane.f32.xlu0 %v693
      %v736 = vpop.xlane.xlu0 %735
      %737 = vadd.xlane.f32.xlu0 %v694
      %v738 = vpop.xlane.xlu0 %737
      %739 = vadd.xlane.f32.xlu0 %v695
      %v740 = vpop.xlane.xlu0 %739
      %741 = vadd.xlane.f32.xlu0 %v696
      %v742 = vpop.xlane.xlu0 %741
      %743 = vadd.xlane.f32.xlu0 %v697
      %v744 = vpop.xlane.xlu0 %743
      %745 = vadd.xlane.f32.xlu0 %v698
      %v746 = vpop.xlane.xlu0 %745
      %747 = vadd.xlane.f32.xlu0 %v699
      %v748 = vpop.xlane.xlu0 %747
      %749 = vadd.xlane.f32.xlu0 %v700
      %v750 = vpop.xlane.xlu0 %749
      %751 = vadd.xlane.f32.xlu0 %v701
      %v752 = vpop.xlane.xlu0 %751
      %753 = vadd.xlane.f32.xlu0 %v702
      %v754 = vpop.xlane.xlu0 %753
      %755 = vadd.xlane.f32.xlu0 %v703
      %v756 = vpop.xlane.xlu0 %755
      %757 = vadd.xlane.f32.xlu0 %v704
      %v758 = vpop.xlane.xlu0 %757
      %759 = vadd.xlane.f32.xlu0 %v705
      %v760 = vpop.xlane.xlu0 %759
      %761 = vadd.xlane.f32.xlu0 %v706
      %v762 = vpop.xlane.xlu0 %761
      %763 = vadd.xlane.f32.xlu0 %v707
      %v764 = vpop.xlane.xlu0 %763
      %765 = vadd.xlane.f32.xlu0 %v708
      %v766 = vpop.xlane.xlu0 %765
      %767 = vadd.xlane.f32.xlu0 %v709
      %v768 = vpop.xlane.xlu0 %767
      %769 = vadd.xlane.f32.xlu0 %v710
      %v770 = vpop.xlane.xlu0 %769
      %771 = vadd.xlane.f32.xlu0 %v711
      %v772 = vpop.xlane.xlu0 %771
      %773 = vadd.xlane.f32.xlu0 %v712
      %v774 = vpop.xlane.xlu0 %773
      %775 = vadd.xlane.f32.xlu0 %v713
      %v776 = vpop.xlane.xlu0 %775
      %777 = vadd.xlane.f32.xlu0 %v714
      %v778 = vpop.xlane.xlu0 %777
      %v779 = vmul.f32 %v716, 0.015625
      %v780 = vmul.f32 %v718, 0.015625
      %v781 = vmul.f32 %v720, 0.015625
      %v782 = vmul.f32 %v722, 0.015625
      %v783 = vmul.f32 %v724, 0.015625
      %v784 = vmul.f32 %v726, 0.015625
      %v785 = vmul.f32 %v728, 0.015625
      %v786 = vmul.f32 %v730, 0.015625
      %v787 = vmul.f32 %v732, 0.015625
      %v788 = vmul.f32 %v734, 0.015625
      %v789 = vmul.f32 %v736, 0.015625
      %v790 = vmul.f32 %v738, 0.015625
      %v791 = vmul.f32 %v740, 0.015625
      %v792 = vmul.f32 %v742, 0.015625
      %v793 = vmul.f32 %v744, 0.015625
      %v794 = vmul.f32 %v746, 0.015625
      %v795 = vmul.f32 %v748, 0.015625
      %v796 = vmul.f32 %v750, 0.015625
      %v797 = vmul.f32 %v752, 0.015625
      %v798 = vmul.f32 %v754, 0.015625
      %v799 = vmul.f32 %v756, 0.015625
      %v800 = vmul.f32 %v758, 0.015625
      %v801 = vmul.f32 %v760, 0.015625
      %v802 = vmul.f32 %v762, 0.015625
      %v803 = vmul.f32 %v764, 0.015625
      %v804 = vmul.f32 %v766, 0.015625
      %v805 = vmul.f32 %v768, 0.015625
      %v806 = vmul.f32 %v770, 0.015625
      %v807 = vmul.f32 %v772, 0.015625
      %v808 = vmul.f32 %v774, 0.015625
      %v809 = vmul.f32 %v776, 0.015625
      %v810 = vmul.f32 %v778, 0.015625
      %v811 = vmul.f32 %v683, %v683
      %v812 = vmul.f32 %v684, %v684
      %v813 = vmul.f32 %v685, %v685
      %v814 = vmul.f32 %v686, %v686
      %v815 = vmul.f32 %v687, %v687
      %v816 = vmul.f32 %v688, %v688
      %v817 = vmul.f32 %v689, %v689
      %v818 = vmul.f32 %v690, %v690
      %v819 = vmul.f32 %v691, %v691
      %v820 = vmul.f32 %v692, %v692
      %v821 = vmul.f32 %v693, %v693
      %v822 = vmul.f32 %v694, %v694
      %v823 = vmul.f32 %v695, %v695
      %v824 = vmul.f32 %v696, %v696
      %v825 = vmul.f32 %v697, %v697
      %v826 = vmul.f32 %v698, %v698
      %v827 = vmul.f32 %v699, %v699
      %v828 = vmul.f32 %v700, %v700
      %v829 = vmul.f32 %v701, %v701
      %v830 = vmul.f32 %v702, %v702
      %v831 = vmul.f32 %v703, %v703
      %v832 = vmul.f32 %v704, %v704
      %v833 = vmul.f32 %v705, %v705
      %v834 = vmul.f32 %v706, %v706
      %v835 = vmul.f32 %v707, %v707
      %v836 = vmul.f32 %v708, %v708
      %v837 = vmul.f32 %v709, %v709
      %v838 = vmul.f32 %v710, %v710
      %v839 = vmul.f32 %v711, %v711
      %v840 = vmul.f32 %v712, %v712
      %v841 = vmul.f32 %v713, %v713
      %v842 = vmul.f32 %v714, %v714
      %843 = vadd.xlane.f32.xlu0 %v811
      %v844 = vpop.xlane.xlu0 %843
      %845 = vadd.xlane.f32.xlu0 %v812
      %v846 = vpop.xlane.xlu0 %845
      %847 = vadd.xlane.f32.xlu0 %v813
      %v848 = vpop.xlane.xlu0 %847
      %849 = vadd.xlane.f32.xlu0 %v814
      %v850 = vpop.xlane.xlu0 %849
      %851 = vadd.xlane.f32.xlu0 %v815
      %v852 = vpop.xlane.xlu0 %851
      %853 = vadd.xlane.f32.xlu0 %v816
      %v854 = vpop.xlane.xlu0 %853
      %855 = vadd.xlane.f32.xlu0 %v817
      %v856 = vpop.xlane.xlu0 %855
      %857 = vadd.xlane.f32.xlu0 %v818
      %v858 = vpop.xlane.xlu0 %857
      %859 = vadd.xlane.f32.xlu0 %v819
      %v860 = vpop.xlane.xlu0 %859
      %861 = vadd.xlane.f32.xlu0 %v820
      %v862 = vpop.xlane.xlu0 %861
      %863 = vadd.xlane.f32.xlu0 %v821
      %v864 = vpop.xlane.xlu0 %863
      %865 = vadd.xlane.f32.xlu0 %v822
      %v866 = vpop.xlane.xlu0 %865
      %867 = vadd.xlane.f32.xlu0 %v823
      %v868 = vpop.xlane.xlu0 %867
      %869 = vadd.xlane.f32.xlu0 %v824
      %v870 = vpop.xlane.xlu0 %869
      %871 = vadd.xlane.f32.xlu0 %v825
      %v872 = vpop.xlane.xlu0 %871
      %873 = vadd.xlane.f32.xlu0 %v826
      %v874 = vpop.xlane.xlu0 %873
      %875 = vadd.xlane.f32.xlu0 %v827
      %v876 = vpop.xlane.xlu0 %875
      %877 = vadd.xlane.f32.xlu0 %v828
      %v878 = vpop.xlane.xlu0 %877
      %879 = vadd.xlane.f32.xlu0 %v829
      %v880 = vpop.xlane.xlu0 %879
      %881 = vadd.xlane.f32.xlu0 %v830
      %v882 = vpop.xlane.xlu0 %881
      %883 = vadd.xlane.f32.xlu0 %v831
      %v884 = vpop.xlane.xlu0 %883
      %885 = vadd.xlane.f32.xlu0 %v832
      %v886 = vpop.xlane.xlu0 %885
      %887 = vadd.xlane.f32.xlu0 %v833
      %v888 = vpop.xlane.xlu0 %887
      %889 = vadd.xlane.f32.xlu0 %v834
      %v890 = vpop.xlane.xlu0 %889
      %891 = vadd.xlane.f32.xlu0 %v835
      %v892 = vpop.xlane.xlu0 %891
      %893 = vadd.xlane.f32.xlu0 %v836
      %v894 = vpop.xlane.xlu0 %893
      %895 = vadd.xlane.f32.xlu0 %v837
      %v896 = vpop.xlane.xlu0 %895
      %897 = vadd.xlane.f32.xlu0 %v838
      %v898 = vpop.xlane.xlu0 %897
      %899 = vadd.xlane.f32.xlu0 %v839
      %v900 = vpop.xlane.xlu0 %899
      %901 = vadd.xlane.f32.xlu0 %v840
      %v902 = vpop.xlane.xlu0 %901
      %903 = vadd.xlane.f32.xlu0 %v841
      %v904 = vpop.xlane.xlu0 %903
      %905 = vadd.xlane.f32.xlu0 %v842
      %v906 = vpop.xlane.xlu0 %905
      %v907 = vmul.f32 %v844, 0.015625
      %v908 = vmul.f32 %v846, 0.015625
      %v909 = vmul.f32 %v848, 0.015625
      %v910 = vmul.f32 %v850, 0.015625
      %v911 = vmul.f32 %v852, 0.015625
      %v912 = vmul.f32 %v854, 0.015625
      %v913 = vmul.f32 %v856, 0.015625
      %v914 = vmul.f32 %v858, 0.015625
      %v915 = vmul.f32 %v860, 0.015625
      %v916 = vmul.f32 %v862, 0.015625
      %v917 = vmul.f32 %v864, 0.015625
      %v918 = vmul.f32 %v866, 0.015625
      %v919 = vmul.f32 %v868, 0.015625
      %v920 = vmul.f32 %v870, 0.015625
      %v921 = vmul.f32 %v872, 0.015625
      %v922 = vmul.f32 %v874, 0.015625
      %v923 = vmul.f32 %v876, 0.015625
      %v924 = vmul.f32 %v878, 0.015625
      %v925 = vmul.f32 %v880, 0.015625
      %v926 = vmul.f32 %v882, 0.015625
      %v927 = vmul.f32 %v884, 0.015625
      %v928 = vmul.f32 %v886, 0.015625
      %v929 = vmul.f32 %v888, 0.015625
      %v930 = vmul.f32 %v890, 0.015625
      %v931 = vmul.f32 %v892, 0.015625
      %v932 = vmul.f32 %v894, 0.015625
      %v933 = vmul.f32 %v896, 0.015625
      %v934 = vmul.f32 %v898, 0.015625
      %v935 = vmul.f32 %v900, 0.015625
      %v936 = vmul.f32 %v902, 0.015625
      %v937 = vmul.f32 %v904, 0.015625
      %v938 = vmul.f32 %v906, 0.015625
      %v939 = vmul.f32 %v779, %v779
      %v940 = vmul.f32 %v780, %v780
      %v941 = vmul.f32 %v781, %v781
      %v942 = vmul.f32 %v782, %v782
      %v943 = vmul.f32 %v783, %v783
      %v944 = vmul.f32 %v784, %v784
      %v945 = vmul.f32 %v785, %v785
      %v946 = vmul.f32 %v786, %v786
      %v947 = vmul.f32 %v787, %v787
      %v948 = vmul.f32 %v788, %v788
      %v949 = vmul.f32 %v789, %v789
      %v950 = vmul.f32 %v790, %v790
      %v951 = vmul.f32 %v791, %v791
      %v952 = vmul.f32 %v792, %v792
      %v953 = vmul.f32 %v793, %v793
      %v954 = vmul.f32 %v794, %v794
      %v955 = vmul.f32 %v795, %v795
      %v956 = vmul.f32 %v796, %v796
      %v957 = vmul.f32 %v797, %v797
      %v958 = vmul.f32 %v798, %v798
      %v959 = vmul.f32 %v799, %v799
      %v960 = vmul.f32 %v800, %v800
      %v961 = vmul.f32 %v801, %v801
      %v962 = vmul.f32 %v802, %v802
      %v963 = vmul.f32 %v803, %v803
      %v964 = vmul.f32 %v804, %v804
      %v965 = vmul.f32 %v805, %v805
      %v966 = vmul.f32 %v806, %v806
      %v967 = vmul.f32 %v807, %v807
      %v968 = vmul.f32 %v808, %v808
      %v969 = vmul.f32 %v809, %v809
      %v970 = vmul.f32 %v810, %v810
      %v971 = vsub.f32 %v907, %v939
      %v972 = vsub.f32 %v908, %v940
      %v973 = vsub.f32 %v909, %v941
      %v974 = vsub.f32 %v910, %v942
      %v975 = vsub.f32 %v911, %v943
      %v976 = vsub.f32 %v912, %v944
      %v977 = vsub.f32 %v913, %v945
      %v978 = vsub.f32 %v914, %v946
      %v979 = vsub.f32 %v915, %v947
      %v980 = vsub.f32 %v916, %v948
      %v981 = vsub.f32 %v917, %v949
      %v982 = vsub.f32 %v918, %v950
      %v983 = vsub.f32 %v919, %v951
      %v984 = vsub.f32 %v920, %v952
      %v985 = vsub.f32 %v921, %v953
      %v986 = vsub.f32 %v922, %v954
      %v987 = vsub.f32 %v923, %v955
      %v988 = vsub.f32 %v924, %v956
      %v989 = vsub.f32 %v925, %v957
      %v990 = vsub.f32 %v926, %v958
      %v991 = vsub.f32 %v927, %v959
      %v992 = vsub.f32 %v928, %v960
      %v993 = vsub.f32 %v929, %v961
      %v994 = vsub.f32 %v930, %v962
      %v995 = vsub.f32 %v931, %v963
      %v996 = vsub.f32 %v932, %v964
      %v997 = vsub.f32 %v933, %v965
      %v998 = vsub.f32 %v934, %v966
      %v999 = vsub.f32 %v935, %v967
      %v1000 = vsub.f32 %v936, %v968
      %v1001 = vsub.f32 %v937, %v969
      %v1002 = vsub.f32 %v938, %v970
      %v1003 = vmax.f32 %v971, 0.0
      %v1004 = vmax.f32 %v972, 0.0
      %v1005 = vmax.f32 %v973, 0.0
      %v1006 = vmax.f32 %v974, 0.0
      %v1007 = vmax.f32 %v975, 0.0
      %v1008 = vmax.f32 %v976, 0.0
      %v1009 = vmax.f32 %v977, 0.0
      %v1010 = vmax.f32 %v978, 0.0
      %v1011 = vmax.f32 %v979, 0.0
      %v1012 = vmax.f32 %v980, 0.0
      %v1013 = vmax.f32 %v981, 0.0
      %v1014 = vmax.f32 %v982, 0.0
      %v1015 = vmax.f32 %v983, 0.0
      %v1016 = vmax.f32 %v984, 0.0
      %v1017 = vmax.f32 %v985, 0.0
      %v1018 = vmax.f32 %v986, 0.0
      %v1019 = vmax.f32 %v987, 0.0
      %v1020 = vmax.f32 %v988, 0.0
      %v1021 = vmax.f32 %v989, 0.0
      %v1022 = vmax.f32 %v990, 0.0
      %v1023 = vmax.f32 %v991, 0.0
      %v1024 = vmax.f32 %v992, 0.0
      %v1025 = vmax.f32 %v993, 0.0
      %v1026 = vmax.f32 %v994, 0.0
      %v1027 = vmax.f32 %v995, 0.0
      %v1028 = vmax.f32 %v996, 0.0
      %v1029 = vmax.f32 %v997, 0.0
      %v1030 = vmax.f32 %v998, 0.0
      %v1031 = vmax.f32 %v999, 0.0
      %v1032 = vmax.f32 %v1000, 0.0
      %v1033 = vmax.f32 %v1001, 0.0
      %v1034 = vmax.f32 %v1002, 0.0
      %v1035 = vsub.f32 %v683, %v779
      %v1036 = vsub.f32 %v684, %v780
      %v1037 = vsub.f32 %v685, %v781
      %v1038 = vsub.f32 %v686, %v782
      %v1039 = vsub.f32 %v687, %v783
      %v1040 = vsub.f32 %v688, %v784
      %v1041 = vsub.f32 %v689, %v785
      %v1042 = vsub.f32 %v690, %v786
      %v1043 = vsub.f32 %v691, %v787
      %v1044 = vsub.f32 %v692, %v788
      %v1045 = vsub.f32 %v693, %v789
      %v1046 = vsub.f32 %v694, %v790
      %v1047 = vsub.f32 %v695, %v791
      %v1048 = vsub.f32 %v696, %v792
      %v1049 = vsub.f32 %v697, %v793
      %v1050 = vsub.f32 %v698, %v794
      %v1051 = vsub.f32 %v699, %v795
      %v1052 = vsub.f32 %v700, %v796
      %v1053 = vsub.f32 %v701, %v797
      %v1054 = vsub.f32 %v702, %v798
      %v1055 = vsub.f32 %v703, %v799
      %v1056 = vsub.f32 %v704, %v800
      %v1057 = vsub.f32 %v705, %v801
      %v1058 = vsub.f32 %v706, %v802
      %v1059 = vsub.f32 %v707, %v803
      %v1060 = vsub.f32 %v708, %v804
      %v1061 = vsub.f32 %v709, %v805
      %v1062 = vsub.f32 %v710, %v806
      %v1063 = vsub.f32 %v711, %v807
      %v1064 = vsub.f32 %v712, %v808
      %v1065 = vsub.f32 %v713, %v809
      %v1066 = vsub.f32 %v714, %v810
      %v1067 = vadd.f32 %v1003, 1e-05
      %v1068 = vadd.f32 %v1004, 1e-05
      %v1069 = vadd.f32 %v1005, 1e-05
      %v1070 = vadd.f32 %v1006, 1e-05
      %v1071 = vadd.f32 %v1007, 1e-05
      %v1072 = vadd.f32 %v1008, 1e-05
      %v1073 = vadd.f32 %v1009, 1e-05
      %v1074 = vadd.f32 %v1010, 1e-05
      %v1075 = vadd.f32 %v1011, 1e-05
      %v1076 = vadd.f32 %v1012, 1e-05
      %v1077 = vadd.f32 %v1013, 1e-05
      %v1078 = vadd.f32 %v1014, 1e-05
      %v1079 = vadd.f32 %v1015, 1e-05
      %v1080 = vadd.f32 %v1016, 1e-05
      %v1081 = vadd.f32 %v1017, 1e-05
      %v1082 = vadd.f32 %v1018, 1e-05
      %v1083 = vadd.f32 %v1019, 1e-05
      %v1084 = vadd.f32 %v1020, 1e-05
      %v1085 = vadd.f32 %v1021, 1e-05
      %v1086 = vadd.f32 %v1022, 1e-05
      %v1087 = vadd.f32 %v1023, 1e-05
      %v1088 = vadd.f32 %v1024, 1e-05
      %v1089 = vadd.f32 %v1025, 1e-05
      %v1090 = vadd.f32 %v1026, 1e-05
      %v1091 = vadd.f32 %v1027, 1e-05
      %v1092 = vadd.f32 %v1028, 1e-05
      %v1093 = vadd.f32 %v1029, 1e-05
      %v1094 = vadd.f32 %v1030, 1e-05
      %v1095 = vadd.f32 %v1031, 1e-05
      %v1096 = vadd.f32 %v1032, 1e-05
      %v1097 = vadd.f32 %v1033, 1e-05
      %v1098 = vadd.f32 %v1034, 1e-05
      %v1099 = vrsqrt.pop %v1067
      %v1100 = vmul.f32 %v1099, %v1067
      %v1101 = vmul.f32 %v1100, %v1099
      %v1102 = vmul.f32 0.5, %v1101
      %v1103 = vsub.f32 1.5, %v1102
      %v1104 = vmul.f32 %v1099, %v1103
      %vm1105 = vweird.f32 %v1067
      %vm1106 = vweird.f32 %v1099
      %vm1107 = vmor %vm1105, %vm1106
      %v1108 = vsel %vm1107, %v1099, %v1104
      %v1109 = vrsqrt.pop %v1068
      %v1110 = vmul.f32 %v1109, %v1068
      %v1111 = vmul.f32 %v1110, %v1109
      %v1112 = vmul.f32 0.5, %v1111
      %v1113 = vsub.f32 1.5, %v1112
      %v1114 = vmul.f32 %v1109, %v1113
      %vm1115 = vweird.f32 %v1068
      %vm1116 = vweird.f32 %v1109
      %vm1117 = vmor %vm1115, %vm1116
      %v1118 = vsel %vm1117, %v1109, %v1114
      %v1119 = vrsqrt.pop %v1069
      %v1120 = vmul.f32 %v1119, %v1069
      %v1121 = vmul.f32 %v1120, %v1119
      %v1122 = vmul.f32 0.5, %v1121
      %v1123 = vsub.f32 1.5, %v1122
      %v1124 = vmul.f32 %v1119, %v1123
      %vm1125 = vweird.f32 %v1069
      %vm1126 = vweird.f32 %v1119
      %vm1127 = vmor %vm1125, %vm1126
      %v1128 = vsel %vm1127, %v1119, %v1124
      %v1129 = vrsqrt.pop %v1070
      %v1130 = vmul.f32 %v1129, %v1070
      %v1131 = vmul.f32 %v1130, %v1129
      %v1132 = vmul.f32 0.5, %v1131
      %v1133 = vsub.f32 1.5, %v1132
      %v1134 = vmul.f32 %v1129, %v1133
      %vm1135 = vweird.f32 %v1070
      %vm1136 = vweird.f32 %v1129
      %vm1137 = vmor %vm1135, %vm1136
      %v1138 = vsel %vm1137, %v1129, %v1134
      %v1139 = vrsqrt.pop %v1071
      %v1140 = vmul.f32 %v1139, %v1071
      %v1141 = vmul.f32 %v1140, %v1139
      %v1142 = vmul.f32 0.5, %v1141
      %v1143 = vsub.f32 1.5, %v1142
      %v1144 = vmul.f32 %v1139, %v1143
      %vm1145 = vweird.f32 %v1071
      %vm1146 = vweird.f32 %v1139
      %vm1147 = vmor %vm1145, %vm1146
      %v1148 = vsel %vm1147, %v1139, %v1144
      %v1149 = vrsqrt.pop %v1072
      %v1150 = vmul.f32 %v1149, %v1072
      %v1151 = vmul.f32 %v1150, %v1149
      %v1152 = vmul.f32 0.5, %v1151
      %v1153 = vsub.f32 1.5, %v1152
      %v1154 = vmul.f32 %v1149, %v1153
      %vm1155 = vweird.f32 %v1072
      %vm1156 = vweird.f32 %v1149
      %vm1157 = vmor %vm1155, %vm1156
      %v1158 = vsel %vm1157, %v1149, %v1154
      %v1159 = vrsqrt.pop %v1073
      %v1160 = vmul.f32 %v1159, %v1073
      %v1161 = vmul.f32 %v1160, %v1159
      %v1162 = vmul.f32 0.5, %v1161
      %v1163 = vsub.f32 1.5, %v1162
      %v1164 = vmul.f32 %v1159, %v1163
      %vm1165 = vweird.f32 %v1073
      %vm1166 = vweird.f32 %v1159
      %vm1167 = vmor %vm1165, %vm1166
      %v1168 = vsel %vm1167, %v1159, %v1164
      %v1169 = vrsqrt.pop %v1074
      %v1170 = vmul.f32 %v1169, %v1074
      %v1171 = vmul.f32 %v1170, %v1169
      %v1172 = vmul.f32 0.5, %v1171
      %v1173 = vsub.f32 1.5, %v1172
      %v1174 = vmul.f32 %v1169, %v1173
      %vm1175 = vweird.f32 %v1074
      %vm1176 = vweird.f32 %v1169
      %vm1177 = vmor %vm1175, %vm1176
      %v1178 = vsel %vm1177, %v1169, %v1174
      %v1179 = vrsqrt.pop %v1075
      %v1180 = vmul.f32 %v1179, %v1075
      %v1181 = vmul.f32 %v1180, %v1179
      %v1182 = vmul.f32 0.5, %v1181
      %v1183 = vsub.f32 1.5, %v1182
      %v1184 = vmul.f32 %v1179, %v1183
      %vm1185 = vweird.f32 %v1075
      %vm1186 = vweird.f32 %v1179
      %vm1187 = vmor %vm1185, %vm1186
      %v1188 = vsel %vm1187, %v1179, %v1184
      %v1189 = vrsqrt.pop %v1076
      %v1190 = vmul.f32 %v1189, %v1076
      %v1191 = vmul.f32 %v1190, %v1189
      %v1192 = vmul.f32 0.5, %v1191
      %v1193 = vsub.f32 1.5, %v1192
      %v1194 = vmul.f32 %v1189, %v1193
      %vm1195 = vweird.f32 %v1076
      %vm1196 = vweird.f32 %v1189
      %vm1197 = vmor %vm1195, %vm1196
      %v1198 = vsel %vm1197, %v1189, %v1194
      %v1199 = vrsqrt.pop %v1077
      %v1200 = vmul.f32 %v1199, %v1077
      %v1201 = vmul.f32 %v1200, %v1199
      %v1202 = vmul.f32 0.5, %v1201
      %v1203 = vsub.f32 1.5, %v1202
      %v1204 = vmul.f32 %v1199, %v1203
      %vm1205 = vweird.f32 %v1077
      %vm1206 = vweird.f32 %v1199
      %vm1207 = vmor %vm1205, %vm1206
      %v1208 = vsel %vm1207, %v1199, %v1204
      %v1209 = vrsqrt.pop %v1078
      %v1210 = vmul.f32 %v1209, %v1078
      %v1211 = vmul.f32 %v1210, %v1209
      %v1212 = vmul.f32 0.5, %v1211
      %v1213 = vsub.f32 1.5, %v1212
      %v1214 = vmul.f32 %v1209, %v1213
      %vm1215 = vweird.f32 %v1078
      %vm1216 = vweird.f32 %v1209
      %vm1217 = vmor %vm1215, %vm1216
      %v1218 = vsel %vm1217, %v1209, %v1214
      %v1219 = vrsqrt.pop %v1079
      %v1220 = vmul.f32 %v1219, %v1079
      %v1221 = vmul.f32 %v1220, %v1219
      %v1222 = vmul.f32 0.5, %v1221
      %v1223 = vsub.f32 1.5, %v1222
      %v1224 = vmul.f32 %v1219, %v1223
      %vm1225 = vweird.f32 %v1079
      %vm1226 = vweird.f32 %v1219
      %vm1227 = vmor %vm1225, %vm1226
      %v1228 = vsel %vm1227, %v1219, %v1224
      %v1229 = vrsqrt.pop %v1080
      %v1230 = vmul.f32 %v1229, %v1080
      %v1231 = vmul.f32 %v1230, %v1229
      %v1232 = vmul.f32 0.5, %v1231
      %v1233 = vsub.f32 1.5, %v1232
      %v1234 = vmul.f32 %v1229, %v1233
      %vm1235 = vweird.f32 %v1080
      %vm1236 = vweird.f32 %v1229
      %vm1237 = vmor %vm1235, %vm1236
      %v1238 = vsel %vm1237, %v1229, %v1234
      %v1239 = vrsqrt.pop %v1081
      %v1240 = vmul.f32 %v1239, %v1081
      %v1241 = vmul.f32 %v1240, %v1239
      %v1242 = vmul.f32 0.5, %v1241
      %v1243 = vsub.f32 1.5, %v1242
      %v1244 = vmul.f32 %v1239, %v1243
      %vm1245 = vweird.f32 %v1081
      %vm1246 = vweird.f32 %v1239
      %vm1247 = vmor %vm1245, %vm1246
      %v1248 = vsel %vm1247, %v1239, %v1244
      %v1249 = vrsqrt.pop %v1082
      %v1250 = vmul.f32 %v1249, %v1082
      %v1251 = vmul.f32 %v1250, %v1249
      %v1252 = vmul.f32 0.5, %v1251
      %v1253 = vsub.f32 1.5, %v1252
      %v1254 = vmul.f32 %v1249, %v1253
      %vm1255 = vweird.f32 %v1082
      %vm1256 = vweird.f32 %v1249
      %vm1257 = vmor %vm1255, %vm1256
      %v1258 = vsel %vm1257, %v1249, %v1254
      %v1259 = vrsqrt.pop %v1083
      %v1260 = vmul.f32 %v1259, %v1083
      %v1261 = vmul.f32 %v1260, %v1259
      %v1262 = vmul.f32 0.5, %v1261
      %v1263 = vsub.f32 1.5, %v1262
      %v1264 = vmul.f32 %v1259, %v1263
      %vm1265 = vweird.f32 %v1083
      %vm1266 = vweird.f32 %v1259
      %vm1267 = vmor %vm1265, %vm1266
      %v1268 = vsel %vm1267, %v1259, %v1264
      %v1269 = vrsqrt.pop %v1084
      %v1270 = vmul.f32 %v1269, %v1084
      %v1271 = vmul.f32 %v1270, %v1269
      %v1272 = vmul.f32 0.5, %v1271
      %v1273 = vsub.f32 1.5, %v1272
      %v1274 = vmul.f32 %v1269, %v1273
      %vm1275 = vweird.f32 %v1084
      %vm1276 = vweird.f32 %v1269
      %vm1277 = vmor %vm1275, %vm1276
      %v1278 = vsel %vm1277, %v1269, %v1274
      %v1279 = vrsqrt.pop %v1085
      %v1280 = vmul.f32 %v1279, %v1085
      %v1281 = vmul.f32 %v1280, %v1279
      %v1282 = vmul.f32 0.5, %v1281
      %v1283 = vsub.f32 1.5, %v1282
      %v1284 = vmul.f32 %v1279, %v1283
      %vm1285 = vweird.f32 %v1085
      %vm1286 = vweird.f32 %v1279
      %vm1287 = vmor %vm1285, %vm1286
      %v1288 = vsel %vm1287, %v1279, %v1284
      %v1289 = vrsqrt.pop %v1086
      %v1290 = vmul.f32 %v1289, %v1086
      %v1291 = vmul.f32 %v1290, %v1289
      %v1292 = vmul.f32 0.5, %v1291
      %v1293 = vsub.f32 1.5, %v1292
      %v1294 = vmul.f32 %v1289, %v1293
      %vm1295 = vweird.f32 %v1086
      %vm1296 = vweird.f32 %v1289
      %vm1297 = vmor %vm1295, %vm1296
      %v1298 = vsel %vm1297, %v1289, %v1294
      %v1299 = vrsqrt.pop %v1087
      %v1300 = vmul.f32 %v1299, %v1087
      %v1301 = vmul.f32 %v1300, %v1299
      %v1302 = vmul.f32 0.5, %v1301
      %v1303 = vsub.f32 1.5, %v1302
      %v1304 = vmul.f32 %v1299, %v1303
      %vm1305 = vweird.f32 %v1087
      %vm1306 = vweird.f32 %v1299
      %vm1307 = vmor %vm1305, %vm1306
      %v1308 = vsel %vm1307, %v1299, %v1304
      %v1309 = vrsqrt.pop %v1088
      %v1310 = vmul.f32 %v1309, %v1088
      %v1311 = vmul.f32 %v1310, %v1309
      %v1312 = vmul.f32 0.5, %v1311
      %v1313 = vsub.f32 1.5, %v1312
      %v1314 = vmul.f32 %v1309, %v1313
      %vm1315 = vweird.f32 %v1088
      %vm1316 = vweird.f32 %v1309
      %vm1317 = vmor %vm1315, %vm1316
      %v1318 = vsel %vm1317, %v1309, %v1314
      %v1319 = vrsqrt.pop %v1089
      %v1320 = vmul.f32 %v1319, %v1089
      %v1321 = vmul.f32 %v1320, %v1319
      %v1322 = vmul.f32 0.5, %v1321
      %v1323 = vsub.f32 1.5, %v1322
      %v1324 = vmul.f32 %v1319, %v1323
      %vm1325 = vweird.f32 %v1089
      %vm1326 = vweird.f32 %v1319
      %vm1327 = vmor %vm1325, %vm1326
      %v1328 = vsel %vm1327, %v1319, %v1324
      %v1329 = vrsqrt.pop %v1090
      %v1330 = vmul.f32 %v1329, %v1090
      %v1331 = vmul.f32 %v1330, %v1329
      %v1332 = vmul.f32 0.5, %v1331
      %v1333 = vsub.f32 1.5, %v1332
      %v1334 = vmul.f32 %v1329, %v1333
      %vm1335 = vweird.f32 %v1090
      %vm1336 = vweird.f32 %v1329
      %vm1337 = vmor %vm1335, %vm1336
      %v1338 = vsel %vm1337, %v1329, %v1334
      %v1339 = vrsqrt.pop %v1091
      %v1340 = vmul.f32 %v1339, %v1091
      %v1341 = vmul.f32 %v1340, %v1339
      %v1342 = vmul.f32 0.5, %v1341
      %v1343 = vsub.f32 1.5, %v1342
      %v1344 = vmul.f32 %v1339, %v1343
      %vm1345 = vweird.f32 %v1091
      %vm1346 = vweird.f32 %v1339
      %vm1347 = vmor %vm1345, %vm1346
      %v1348 = vsel %vm1347, %v1339, %v1344
      %v1349 = vrsqrt.pop %v1092
      %v1350 = vmul.f32 %v1349, %v1092
      %v1351 = vmul.f32 %v1350, %v1349
      %v1352 = vmul.f32 0.5, %v1351
      %v1353 = vsub.f32 1.5, %v1352
      %v1354 = vmul.f32 %v1349, %v1353
      %vm1355 = vweird.f32 %v1092
      %vm1356 = vweird.f32 %v1349
      %vm1357 = vmor %vm1355, %vm1356
      %v1358 = vsel %vm1357, %v1349, %v1354
      %v1359 = vrsqrt.pop %v1093
      %v1360 = vmul.f32 %v1359, %v1093
      %v1361 = vmul.f32 %v1360, %v1359
      %v1362 = vmul.f32 0.5, %v1361
      %v1363 = vsub.f32 1.5, %v1362
      %v1364 = vmul.f32 %v1359, %v1363
      %vm1365 = vweird.f32 %v1093
      %vm1366 = vweird.f32 %v1359
      %vm1367 = vmor %vm1365, %vm1366
      %v1368 = vsel %vm1367, %v1359, %v1364
      %v1369 = vrsqrt.pop %v1094
      %v1370 = vmul.f32 %v1369, %v1094
      %v1371 = vmul.f32 %v1370, %v1369
      %v1372 = vmul.f32 0.5, %v1371
      %v1373 = vsub.f32 1.5, %v1372
      %v1374 = vmul.f32 %v1369, %v1373
      %vm1375 = vweird.f32 %v1094
      %vm1376 = vweird.f32 %v1369
      %vm1377 = vmor %vm1375, %vm1376
      %v1378 = vsel %vm1377, %v1369, %v1374
      %v1379 = vrsqrt.pop %v1095
      %v1380 = vmul.f32 %v1379, %v1095
      %v1381 = vmul.f32 %v1380, %v1379
      %v1382 = vmul.f32 0.5, %v1381
      %v1383 = vsub.f32 1.5, %v1382
      %v1384 = vmul.f32 %v1379, %v1383
      %vm1385 = vweird.f32 %v1095
      %vm1386 = vweird.f32 %v1379
      %vm1387 = vmor %vm1385, %vm1386
      %v1388 = vsel %vm1387, %v1379, %v1384
      %v1389 = vrsqrt.pop %v1096
      %v1390 = vmul.f32 %v1389, %v1096
      %v1391 = vmul.f32 %v1390, %v1389
      %v1392 = vmul.f32 0.5, %v1391
      %v1393 = vsub.f32 1.5, %v1392
      %v1394 = vmul.f32 %v1389, %v1393
      %vm1395 = vweird.f32 %v1096
      %vm1396 = vweird.f32 %v1389
      %vm1397 = vmor %vm1395, %vm1396
      %v1398 = vsel %vm1397, %v1389, %v1394
      %v1399 = vrsqrt.pop %v1097
      %v1400 = vmul.f32 %v1399, %v1097
      %v1401 = vmul.f32 %v1400, %v1399
      %v1402 = vmul.f32 0.5, %v1401
      %v1403 = vsub.f32 1.5, %v1402
      %v1404 = vmul.f32 %v1399, %v1403
      %vm1405 = vweird.f32 %v1097
      %vm1406 = vweird.f32 %v1399
      %vm1407 = vmor %vm1405, %vm1406
      %v1408 = vsel %vm1407, %v1399, %v1404
      %v1409 = vrsqrt.pop %v1098
      %v1410 = vmul.f32 %v1409, %v1098
      %v1411 = vmul.f32 %v1410, %v1409
      %v1412 = vmul.f32 0.5, %v1411
      %v1413 = vsub.f32 1.5, %v1412
      %v1414 = vmul.f32 %v1409, %v1413
      %vm1415 = vweird.f32 %v1098
      %vm1416 = vweird.f32 %v1409
      %vm1417 = vmor %vm1415, %vm1416
      %v1418 = vsel %vm1417, %v1409, %v1414
      %v1419 = vmul.f32 %v1035, %v1108
      %v1420 = vmul.f32 %v1036, %v1118
      %v1421 = vmul.f32 %v1037, %v1128
      %v1422 = vmul.f32 %v1038, %v1138
      %v1423 = vmul.f32 %v1039, %v1148
      %v1424 = vmul.f32 %v1040, %v1158
      %v1425 = vmul.f32 %v1041, %v1168
      %v1426 = vmul.f32 %v1042, %v1178
      %v1427 = vmul.f32 %v1043, %v1188
      %v1428 = vmul.f32 %v1044, %v1198
      %v1429 = vmul.f32 %v1045, %v1208
      %v1430 = vmul.f32 %v1046, %v1218
      %v1431 = vmul.f32 %v1047, %v1228
      %v1432 = vmul.f32 %v1048, %v1238
      %v1433 = vmul.f32 %v1049, %v1248
      %v1434 = vmul.f32 %v1050, %v1258
      %v1435 = vmul.f32 %v1051, %v1268
      %v1436 = vmul.f32 %v1052, %v1278
      %v1437 = vmul.f32 %v1053, %v1288
      %v1438 = vmul.f32 %v1054, %v1298
      %v1439 = vmul.f32 %v1055, %v1308
      %v1440 = vmul.f32 %v1056, %v1318
      %v1441 = vmul.f32 %v1057, %v1328
      %v1442 = vmul.f32 %v1058, %v1338
      %v1443 = vmul.f32 %v1059, %v1348
      %v1444 = vmul.f32 %v1060, %v1358
      %v1445 = vmul.f32 %v1061, %v1368
      %v1446 = vmul.f32 %v1062, %v1378
      %v1447 = vmul.f32 %v1063, %v1388
      %v1448 = vmul.f32 %v1064, %v1398
      %v1449 = vmul.f32 %v1065, %v1408
      %v1450 = vmul.f32 %v1066, %v1418
      %v1451 = vld [vmem:[%s3] sm:$0x1]
      %v1453 = vperm.slane %v1451, 0
      %v1455 = vmul.f32 %v1419, %v1453
      %v1456 = vmul.f32 %v1420, %v1453
      %v1457 = vmul.f32 %v1421, %v1453
      %v1458 = vmul.f32 %v1422, %v1453
      %v1459 = vmul.f32 %v1423, %v1453
      %v1460 = vmul.f32 %v1424, %v1453
      %v1461 = vmul.f32 %v1425, %v1453
      %v1462 = vmul.f32 %v1426, %v1453
      %v1463 = vmul.f32 %v1427, %v1453
      %v1464 = vmul.f32 %v1428, %v1453
      %v1465 = vmul.f32 %v1429, %v1453
      %v1466 = vmul.f32 %v1430, %v1453
      %v1467 = vmul.f32 %v1431, %v1453
      %v1468 = vmul.f32 %v1432, %v1453
      %v1469 = vmul.f32 %v1433, %v1453
      %v1470 = vmul.f32 %v1434, %v1453
      %v1471 = vmul.f32 %v1435, %v1453
      %v1472 = vmul.f32 %v1436, %v1453
      %v1473 = vmul.f32 %v1437, %v1453
      %v1474 = vmul.f32 %v1438, %v1453
      %v1475 = vmul.f32 %v1439, %v1453
      %v1476 = vmul.f32 %v1440, %v1453
      %v1477 = vmul.f32 %v1441, %v1453
      %v1478 = vmul.f32 %v1442, %v1453
      %v1479 = vmul.f32 %v1443, %v1453
      %v1480 = vmul.f32 %v1444, %v1453
      %v1481 = vmul.f32 %v1445, %v1453
      %v1482 = vmul.f32 %v1446, %v1453
      %v1483 = vmul.f32 %v1447, %v1453
      %v1484 = vmul.f32 %v1448, %v1453
      %v1485 = vmul.f32 %v1449, %v1453
      %v1486 = vmul.f32 %v1450, %v1453
      %v1487 = vld [vmem:[%s4] sm:$0x1]
      %v1489 = vperm.slane %v1487, 0
      %v1491 = vadd.f32 %v1455, %v1489
      %v1492 = vadd.f32 %v1456, %v1489
      %v1493 = vadd.f32 %v1457, %v1489
      %v1494 = vadd.f32 %v1458, %v1489
      %v1495 = vadd.f32 %v1459, %v1489
      %v1496 = vadd.f32 %v1460, %v1489
      %v1497 = vadd.f32 %v1461, %v1489
      %v1498 = vadd.f32 %v1462, %v1489
      %v1499 = vadd.f32 %v1463, %v1489
      %v1500 = vadd.f32 %v1464, %v1489
      %v1501 = vadd.f32 %v1465, %v1489
      %v1502 = vadd.f32 %v1466, %v1489
      %v1503 = vadd.f32 %v1467, %v1489
      %v1504 = vadd.f32 %v1468, %v1489
      %v1505 = vadd.f32 %v1469, %v1489
      %v1506 = vadd.f32 %v1470, %v1489
      %v1507 = vadd.f32 %v1471, %v1489
      %v1508 = vadd.f32 %v1472, %v1489
      %v1509 = vadd.f32 %v1473, %v1489
      %v1510 = vadd.f32 %v1474, %v1489
      %v1511 = vadd.f32 %v1475, %v1489
      %v1512 = vadd.f32 %v1476, %v1489
      %v1513 = vadd.f32 %v1477, %v1489
      %v1514 = vadd.f32 %v1478, %v1489
      %v1515 = vadd.f32 %v1479, %v1489
      %v1516 = vadd.f32 %v1480, %v1489
      %v1517 = vadd.f32 %v1481, %v1489
      %v1518 = vadd.f32 %v1482, %v1489
      %v1519 = vadd.f32 %v1483, %v1489
      %v1520 = vadd.f32 %v1484, %v1489
      %v1521 = vadd.f32 %v1485, %v1489
      %v1522 = vadd.f32 %v1486, %v1489
      %v1523 = vld [vmem:[%s5] sm:$0xff]
      %v1524 = vld [vmem:[%s5 + $0x8] sm:$0xff]
      %v1525 = vld [vmem:[%s5 + $0x10] sm:$0xff]
      %v1526 = vld [vmem:[%s5 + $0x18] sm:$0xff]
      %v1527 = vld [vmem:[%s5 + $0x20] sm:$0xff]
      %v1528 = vld [vmem:[%s5 + $0x28] sm:$0xff]
      %v1529 = vld [vmem:[%s5 + $0x30] sm:$0xff]
      %v1530 = vld [vmem:[%s5 + $0x38] sm:$0xff]
      %v1531 = vld [vmem:[%s5 + $0x40] sm:$0xff]
      %v1532 = vld [vmem:[%s5 + $0x48] sm:$0xff]
      %v1533 = vld [vmem:[%s5 + $0x50] sm:$0xff]
      %v1534 = vld [vmem:[%s5 + $0x58] sm:$0xff]
      %v1535 = vld [vmem:[%s5 + $0x60] sm:$0xff]
      %v1536 = vld [vmem:[%s5 + $0x68] sm:$0xff]
      %v1537 = vld [vmem:[%s5 + $0x70] sm:$0xff]
      %v1538 = vld [vmem:[%s5 + $0x78] sm:$0xff]
      %v1539 = vld [vmem:[%s6] sm:$0x1]
      %v1541 = vperm.slane %v1539, 0
      %1543 = vmatpush.msra.mxu0 %v1538
      %1544 = vmatpush.msra.mxu0 %v1537
      %1545 = vmatpush.msra.mxu0 %v1536
      %1546 = vmatpush.msra.mxu0 %v1535
      %1547 = vmatpush.msra.mxu0 %v1534
      %1548 = vmatpush.msra.mxu0 %v1533
      %1549 = vmatpush.msra.mxu0 %v1532
      %1550 = vmatpush.msra.mxu0 %v1531
      %1551 = vmatpush.msra.mxu0 %v1530
      %1552 = vmatpush.msra.mxu0 %v1529
      %1553 = vmatpush.msra.mxu0 %v1528
      %1554 = vmatpush.msra.mxu0 %v1527
      %1555 = vmatpush.msra.mxu0 %v1526
      %1556 = vmatpush.msra.mxu0 %v1525
      %1557 = vmatpush.msra.mxu0 %v1524
      %1558 = vmatpush.msra.mxu0 %v1523
      %1559 = vmatmul.f32.gmra.mxu0 %v1491
      %v1560 = vpop.f32.mrf.mxu0
      %v1561 = vadd.f32 %v1541, %v1560
      %1562 = vmatmul.f32.gmra.mxu0 %v1492
      %v1563 = vpop.f32.mrf.mxu0
      %v1564 = vadd.f32 %v1541, %v1563
      %1565 = vmatmul.f32.gmra.mxu0 %v1493
      %v1566 = vpop.f32.mrf.mxu0
      %v1567 = vadd.f32 %v1541, %v1566
      %1568 = vmatmul.f32.gmra.mxu0 %v1494
      %v1569 = vpop.f32.mrf.mxu0
      %v1570 = vadd.f32 %v1541, %v1569
      %1571 = vmatmul.f32.gmra.mxu0 %v1495
      %v1572 = vpop.f32.mrf.mxu0
      %v1573 = vadd.f32 %v1541, %v1572
      %1574 = vmatmul.f32.gmra.mxu0 %v1496
      %v1575 = vpop.f32.mrf.mxu0
      %v1576 = vadd.f32 %v1541, %v1575
      %1577 = vmatmul.f32.gmra.mxu0 %v1497
      %v1578 = vpop.f32.mrf.mxu0
      %v1579 = vadd.f32 %v1541, %v1578
      %1580 = vmatmul.f32.gmra.mxu0 %v1498
      %v1581 = vpop.f32.mrf.mxu0
      %v1582 = vadd.f32 %v1541, %v1581
      %1583 = vmatmul.f32.gmra.mxu0 %v1499
      %v1584 = vpop.f32.mrf.mxu0
      %v1585 = vadd.f32 %v1541, %v1584
      %1586 = vmatmul.f32.gmra.mxu0 %v1500
      %v1587 = vpop.f32.mrf.mxu0
      %v1588 = vadd.f32 %v1541, %v1587
      %1589 = vmatmul.f32.gmra.mxu0 %v1501
      %v1590 = vpop.f32.mrf.mxu0
      %v1591 = vadd.f32 %v1541, %v1590
      %1592 = vmatmul.f32.gmra.mxu0 %v1502
      %v1593 = vpop.f32.mrf.mxu0
      %v1594 = vadd.f32 %v1541, %v1593
      %1595 = vmatmul.f32.gmra.mxu0 %v1503
      %v1596 = vpop.f32.mrf.mxu0
      %v1597 = vadd.f32 %v1541, %v1596
      %1598 = vmatmul.f32.gmra.mxu0 %v1504
      %v1599 = vpop.f32.mrf.mxu0
      %v1600 = vadd.f32 %v1541, %v1599
      %1601 = vmatmul.f32.gmra.mxu0 %v1505
      %v1602 = vpop.f32.mrf.mxu0
      %v1603 = vadd.f32 %v1541, %v1602
      %1604 = vmatmul.f32.gmra.mxu0 %v1506
      %v1605 = vpop.f32.mrf.mxu0
      %v1606 = vadd.f32 %v1541, %v1605
      %1607 = vmatmul.f32.gmra.mxu0 %v1507
      %v1608 = vpop.f32.mrf.mxu0
      %v1609 = vadd.f32 %v1541, %v1608
      %1610 = vmatmul.f32.gmra.mxu0 %v1508
      %v1611 = vpop.f32.mrf.mxu0
      %v1612 = vadd.f32 %v1541, %v1611
      %1613 = vmatmul.f32.gmra.mxu0 %v1509
      %v1614 = vpop.f32.mrf.mxu0
      %v1615 = vadd.f32 %v1541, %v1614
      %1616 = vmatmul.f32.gmra.mxu0 %v1510
      %v1617 = vpop.f32.mrf.mxu0
      %v1618 = vadd.f32 %v1541, %v1617
      %1619 = vmatmul.f32.gmra.mxu0 %v1511
      %v1620 = vpop.f32.mrf.mxu0
      %v1621 = vadd.f32 %v1541, %v1620
      %1622 = vmatmul.f32.gmra.mxu0 %v1512
      %v1623 = vpop.f32.mrf.mxu0
      %v1624 = vadd.f32 %v1541, %v1623
      %1625 = vmatmul.f32.gmra.mxu0 %v1513
      %v1626 = vpop.f32.mrf.mxu0
      %v1627 = vadd.f32 %v1541, %v1626
      %1628 = vmatmul.f32.gmra.mxu0 %v1514
      %v1629 = vpop.f32.mrf.mxu0
      %v1630 = vadd.f32 %v1541, %v1629
      %1631 = vmatmul.f32.gmra.mxu0 %v1515
      %v1632 = vpop.f32.mrf.mxu0
      %v1633 = vadd.f32 %v1541, %v1632
      %1634 = vmatmul.f32.gmra.mxu0 %v1516
      %v1635 = vpop.f32.mrf.mxu0
      %v1636 = vadd.f32 %v1541, %v1635
      %1637 = vmatmul.f32.gmra.mxu0 %v1517
      %v1638 = vpop.f32.mrf.mxu0
      %v1639 = vadd.f32 %v1541, %v1638
      %1640 = vmatmul.f32.gmra.mxu0 %v1518
      %v1641 = vpop.f32.mrf.mxu0
      %v1642 = vadd.f32 %v1541, %v1641
      %1643 = vmatmul.f32.gmra.mxu0 %v1519
      %v1644 = vpop.f32.mrf.mxu0
      %v1645 = vadd.f32 %v1541, %v1644
      %1646 = vmatmul.f32.gmra.mxu0 %v1520
      %v1647 = vpop.f32.mrf.mxu0
      %v1648 = vadd.f32 %v1541, %v1647
      %1649 = vmatmul.f32.gmra.mxu0 %v1521
      %v1650 = vpop.f32.mrf.mxu0
      %v1651 = vadd.f32 %v1541, %v1650
      %1652 = vmatmul.f32.gmra.mxu0 %v1522
      %v1653 = vpop.f32.mrf.mxu0
      %v1654 = vadd.f32 %v1541, %v1653
      %1655 = vdwg.mxu0
      %1656 = vst.msk [vmem:[%s280] sm:$0xff] %vm328, %v1561
      %1657 = vst.msk [vmem:[%s280 + $0x8] sm:$0xff] %vm328, %v1564
      %1658 = vst.msk [vmem:[%s280 + $0x10] sm:$0xff] %vm328, %v1567
      %1659 = vst.msk [vmem:[%s280 + $0x18] sm:$0xff] %vm328, %v1570
      %1660 = vst.msk [vmem:[%s280 + $0x20] sm:$0xff] %vm328, %v1573
      %1661 = vst.msk [vmem:[%s280 + $0x28] sm:$0xff] %vm328, %v1576
      %1662 = vst.msk [vmem:[%s280 + $0x30] sm:$0xff] %vm328, %v1579
      %1663 = vst.msk [vmem:[%s280 + $0x38] sm:$0xff] %vm328, %v1582
      %1664 = vst.msk [vmem:[%s280 + $0x40] sm:$0xff] %vm328, %v1585
      %1665 = vst.msk [vmem:[%s280 + $0x48] sm:$0xff] %vm328, %v1588
      %1666 = vst.msk [vmem:[%s280 + $0x50] sm:$0xff] %vm328, %v1591
      %1667 = vst.msk [vmem:[%s280 + $0x58] sm:$0xff] %vm328, %v1594
      %1668 = vst.msk [vmem:[%s280 + $0x60] sm:$0xff] %vm328, %v1597
      %1669 = vst.msk [vmem:[%s280 + $0x68] sm:$0xff] %vm328, %v1600
      %1670 = vst.msk [vmem:[%s280 + $0x70] sm:$0xff] %vm328, %v1603
      %1671 = vst.msk [vmem:[%s280 + $0x78] sm:$0xff] %vm328, %v1606
      %1672 = vst.msk [vmem:[%s280 + $0x80] sm:$0xff] %vm328, %v1609
      %1673 = vst.msk [vmem:[%s280 + $0x88] sm:$0xff] %vm328, %v1612
      %1674 = vst.msk [vmem:[%s280 + $0x90] sm:$0xff] %vm328, %v1615
      %1675 = vst.msk [vmem:[%s280 + $0x98] sm:$0xff] %vm328, %v1618
      %1676 = vst.msk [vmem:[%s280 + $0xa0] sm:$0xff] %vm328, %v1621
      %1677 = vst.msk [vmem:[%s280 + $0xa8] sm:$0xff] %vm328, %v1624
      %1678 = vst.msk [vmem:[%s280 + $0xb0] sm:$0xff] %vm328, %v1627
      %1679 = vst.msk [vmem:[%s280 + $0xb8] sm:$0xff] %vm328, %v1630
      %1680 = vst.msk [vmem:[%s280 + $0xc0] sm:$0xff] %vm328, %v1633
      %1681 = vst.msk [vmem:[%s280 + $0xc8] sm:$0xff] %vm328, %v1636
      %1682 = vst.msk [vmem:[%s280 + $0xd0] sm:$0xff] %vm328, %v1639
      %1683 = vst.msk [vmem:[%s280 + $0xd8] sm:$0xff] %vm328, %v1642
      %1684 = vst.msk [vmem:[%s280 + $0xe0] sm:$0xff] %vm328, %v1645
      %1685 = vst.msk [vmem:[%s280 + $0xe8] sm:$0xff] %vm328, %v1648
      %1686 = vst.msk [vmem:[%s280 + $0xf0] sm:$0xff] %vm328, %v1651
      %1687 = vst.msk [vmem:[%s280 + $0xf8] sm:$0xff] %vm328, %v1654
      %s1688 = smul.u32 32, %s18
      %p1689 = scmp.lt.s32.totalorder %s1688, 63
      %s1690 = scalar_select %p1689, %s1688, 63
      %s1691 = smul.addr %s1690, 8
      %s1692 = scalar_lea.vmem %s7, %s1691
      // Predicated region
      $region49: #{tpu_custom_call.1} parent=47 // pred_check
        %p1693 = pneg %p188
      $region50: #{tpu_custom_call.1} parent=47 // pred_check_branch
        %1695 = sbr.rel (%p1693) target = $region52
      $region51: #{tpu_custom_call.1} parent=47 // pred_region
        %s1696 = smul.u32 32, %s18
      $region52: #{tpu_custom_call.1} parent=47 // pred_fallthru
        _
    $region48: #{tpu_custom_call.1} parent=5 // pred_fallthru
      _
    %p1697 = scmp.le.s32.totalorder 2, %s13
    // Predicated region
    $region53: #{tpu_custom_call.1} parent=5 // pred_check
      %p1698 = pneg %p1697
    $region54: #{tpu_custom_call.1} parent=5 // pred_check_branch
      %1700 = sbr.rel (%p1698) target = $region56
    $region55: #{tpu_custom_call.1} parent=5 // pred_region
      %s1701 = ssub.s32 %s13, 2
      // Predicated region
      $region57: #{tpu_custom_call.1} parent=55 // pred_check
        %p1702 = pneg %p194
      $region58: #{tpu_custom_call.1} parent=55 // pred_check_branch
        %1704 = sbr.rel (%p1702) target = $region60
      $region59: #{tpu_custom_call.1} parent=55 // pred_region
        %s1705 = smul.u32 32, %s19
        %p1706 = scmp.lt.s32.totalorder %s1705, 63
        %s1707 = scalar_select %p1706, %s1705, 63
        %s1708 = smul.addr %s1707, 8
        %s1709 = scalar_lea.vmem %s7, %s1708
      $region60: #{tpu_custom_call.1} parent=55 // pred_fallthru
        _
    $region56: #{tpu_custom_call.1} parent=5 // pred_fallthru
      _
  $region6: #{tpu_custom_call.1} parent=0 // loop_footer
    %s17 = sadd.s32 1, %s13
  $region7: #{tpu_custom_call.1} parent=0 // loop_footer_branch
    %12 = sbr.rel target = $region3
  $region8: #{tpu_custom_call.1} parent=0 // loop_exit
    _

</llo_original>
